<compile_context>
chip_gen: v5e
topology: v5e:2x2
jax: 0.10.0
libtpu: 0.0.40
codegen_flags: <defaults>
</compile_context>

<pallas_src>
import functools

import jax
import jax.numpy as jnp
from jax.experimental import pallas as pl
from jax.experimental.pallas import tpu as pltpu


def _round_up(x, m):
    return ((x + m - 1) // m) * m


def _convlstm_kernel(xcol_ref, wx_ref, wh_ref, peep_ref, mask_ref, out_ref,
                     hslab_ref, c_ref, *,
                     ksize, pad, ww, cout, activation, nlanes):
    """One grid step == one (batch block, time step) of the recurrence."""
    t = pl.program_id(1)
    n_t = pl.num_programs(1)
    act = jnp.tanh if activation == 'tanh' else jax.nn.relu

    # Fresh batch block: zero the recurrent state (H im2col columns + C).
    @pl.when(t == 0)
    def _init():
        hslab_ref[...] = jnp.zeros_like(hslab_ref)
        c_ref[...] = jnp.zeros_like(c_ref)

    # conv(cat([X, H_prev])) + bias == dot(Wx|b, Xcols|1) + dot(Wh, Hslab).
    # bf16 MXU inputs, f32 accumulation (native fast path).
    acc = jnp.dot(wx_ref[...], xcol_ref[...],
                  preferred_element_type=jnp.float32)
    acc = acc + jnp.dot(wh_ref[...], hslab_ref[...],
                        preferred_element_type=jnp.float32)

    # Gates are 16-row (sublane-aligned) slices: channels live in sublanes.
    i_conv = acc[0 * cout:1 * cout, :]
    f_conv = acc[1 * cout:2 * cout, :]
    g_conv = acc[2 * cout:3 * cout, :]
    o_conv = acc[3 * cout:4 * cout, :]

    wci = peep_ref[0 * cout:1 * cout, :]
    wcf = peep_ref[1 * cout:2 * cout, :]
    wco = peep_ref[2 * cout:3 * cout, :]

    def sig(x):  # sigmoid via a single EUP tanh (no exp + divide)
        return 0.5 * jnp.tanh(0.5 * x) + 0.5

    c_prev = c_ref[...]                      # (Cout, N) f32
    input_gate = sig(i_conv + wci * c_prev)
    forget_gate = sig(f_conv + wcf * c_prev)
    c_new = forget_gate * c_prev + input_gate * act(g_conv)
    output_gate = sig(o_conv + wco * c_new)
    h_new = output_gate * act(c_new)

    c_ref[...] = c_new
    out_ref[...] = h_new.astype(out_ref.dtype)   # lane-dense (Cout, N) store

    # Refresh the H im2col columns for step t+1: a conv window shift (dy,dx)
    # is a lane roll of the flattened spatial axis plus a precomputed halo
    # mask (0/1).  Stores are full-width, 16-row-aligned bf16 blocks.
    @pl.when(t + 1 < n_t)
    def _refresh_h_columns():
        for dy in range(ksize):
            for dx in range(ksize):
                tp = dy * ksize + dx
                shift = (dy - pad) * ww + (dx - pad)
                shifted = h_new if shift == 0 else pltpu.roll(
                    h_new, (-shift) % nlanes, 1)
                masked = shifted * mask_ref[tp]           # (Cout, N) f32
                hslab_ref[tp * cout:(tp + 1) * cout, :] = (
                    masked.astype(hslab_ref.dtype))


def convlstm_pallas(X, conv_weight, conv_bias, W_ci, W_cf, W_co,
                    *, padding, activation='tanh', batch_block=None):
    """ConvLSTM forward.

    X:           (B, Cin, T, H, W)          float32 (PyTorch NCHW + time axis)
    conv_weight: (4*Cout, Cin+Cout, k, k)   float32 (PyTorch OIHW)
    conv_bias:   (4*Cout,)
    W_ci/cf/co:  (Cout, H, W)
    returns:     (B, Cout, T, H, W)         float32
    """
    B, Cin, T, H, W = X.shape
    Cout4, cin_cout, k, _ = conv_weight.shape
    Cout = Cout4 // 4
    assert cin_cout == Cin + Cout
    p = padding
    assert 2 * p == k - 1, "ConvLSTM needs 'same' padding for shape consistency"
    M = H * W
    if batch_block is None:
        batch_block = B       # full pack (v5e/v6e); on v7x use B//2 for 2 TCs
    assert B % batch_block == 0
    Bb = B // batch_block
    N = batch_block * M       # packed lane width per grid step

    KX = k * k * Cin
    KXb = KX + 1                       # + ones row (bias folded into matmul)
    KXp = _round_up(KXb, 16)           # 16-align for bf16 sublane tiles
    KH = k * k * Cout
    f32, bf16 = jnp.float32, jnp.bfloat16

    # ---- one-time layout plumbing (plain JAX) ----
    # X im2col, tap-major / cin-minor rows, flattened spatial in lanes,
    # plus a ones row for the bias; batch packed into lanes (batch-major).
    xp = jnp.pad(X.astype(f32), ((0, 0), (0, 0), (0, 0), (p, p), (p, p)))
    taps = [xp[:, :, :, dy:dy + H, dx:dx + W]
            for dy in range(k) for dx in range(k)]        # each (B, Cin, T, H, W)
    x_col = jnp.stack(taps, axis=1).reshape(B, KX, T, M)
    x_col = jnp.transpose(x_col, (0, 2, 1, 3))            # (B, T, KX, M)
    x_col = jnp.concatenate(
        [x_col, jnp.ones((B, T, 1, M), f32),
         jnp.zeros((B, T, KXp - KXb, M), f32)], axis=2)   # (B, T, KXp, M)
    x_col = x_col.reshape(Bb, batch_block, T, KXp, M)
    x_col = jnp.transpose(x_col, (0, 2, 3, 1, 4)).reshape(Bb, T, KXp, N)
    x_col = x_col.astype(bf16)

    # Flattened conv weights (bf16 MXU inputs); bias as an extra X column.
    w = jnp.transpose(conv_weight.astype(f32), (0, 2, 3, 1))  # (4C, k, k, Cin+Cout)
    wx = w[..., :Cin].reshape(Cout4, KX)                      # cols: tp*Cin + cin
    wx = jnp.concatenate(
        [wx, conv_bias.astype(f32).reshape(Cout4, 1),
         jnp.zeros((Cout4, KXp - KXb), f32)], axis=1).astype(bf16)
    wh = w[..., Cin:].reshape(Cout4, KH).astype(bf16)         # cols: tp*Cout + c

    # Peephole weights and k*k halo masks, tiled over the packed batch lanes.
    peep = jnp.concatenate([W_ci, W_cf, W_co], axis=0).astype(f32)
    peep = jnp.tile(peep.reshape(3 * Cout, M), (1, batch_block))  # (3C, N)

    yy, xx = jnp.meshgrid(jnp.arange(H), jnp.arange(W), indexing='ij')
    yy = yy.reshape(1, M)
    xx = xx.reshape(1, M)
    masks = []
    for dy in range(k):
        for dx in range(k):
            oy, ox = dy - p, dx - p
            masks.append((yy + oy >= 0) & (yy + oy < H) &
                         (xx + ox >= 0) & (xx + ox < W))
    mask = jnp.concatenate(masks, axis=0).astype(f32)         # (k*k, M)
    mask = jnp.tile(mask, (1, batch_block))                   # (k*k, N)
    mask = jnp.broadcast_to(mask[:, None, :], (k * k, Cout, N))  # pre-broadcast

    kernel = functools.partial(
        _convlstm_kernel, ksize=k, pad=p, ww=W,
        cout=Cout, activation=activation, nlanes=N)

    flops = 2 * Bb * T * Cout4 * (KXp + KH) * N
    transcendentals = 5 * Bb * T * Cout * N
    bytes_accessed = (x_col.size * 2 + Bb * T * Cout * N * 4
                      + (peep.size + mask.size) * 4 + (wx.size + wh.size) * 2)

    out = pl.pallas_call(
        kernel,
        out_shape=jax.ShapeDtypeStruct((Bb, T, Cout, N), f32),
        grid_spec=pltpu.PrefetchScalarGridSpec(
            num_scalar_prefetch=0,
            grid=(Bb, T),
            in_specs=[
                pl.BlockSpec((None, None, KXp, N), lambda b, t: (b, t, 0, 0)),
                pl.BlockSpec((Cout4, KXp), lambda b, t: (0, 0)),
                pl.BlockSpec((Cout4, KH), lambda b, t: (0, 0)),
                pl.BlockSpec((3 * Cout, N), lambda b, t: (0, 0)),
                pl.BlockSpec((k * k, Cout, N), lambda b, t: (0, 0, 0)),
            ],
            out_specs=pl.BlockSpec((None, None, Cout, N),
                                   lambda b, t: (b, t, 0, 0)),
            scratch_shapes=[
                pltpu.VMEM((KH, N), bf16),    # H im2col columns (recurrent)
                pltpu.VMEM((Cout, N), f32),   # cell state C (f32)
            ],
        ),
        compiler_params=pltpu.CompilerParams(
            dimension_semantics=("parallel", "arbitrary"),
            vmem_limit_bytes=32 * 1024 * 1024),
        cost_estimate=pl.CostEstimate(
            flops=flops, transcendentals=transcendentals,
            bytes_accessed=bytes_accessed),
    )(x_col, wx, wh, peep, mask)

    # (Bb, T, Cout, batch_block*H*W) -> (B, Cout, T, H, W)
    out = out.reshape(Bb, T, Cout, batch_block, H, W)
    out = jnp.transpose(out, (0, 3, 2, 1, 4, 5)).reshape(B, Cout, T, H, W)
    return out


def convlstm_ref(X, conv_weight, conv_bias, W_ci, W_cf, W_co,
                 *, padding, activation='tanh', matmul_dtype=jnp.float32):
    """Pure-JAX reference matching the PyTorch module semantics (NCHW).

    matmul_dtype=bfloat16 mirrors the kernel's bf16-input / f32-accumulate
    matmul (and bf16 bias column) so the kernel algorithm can be checked at
    tight tolerance; matmul_dtype=float32 is the full module semantics.
    """
    B, Cin, T, H, W = X.shape
    Cout = W_ci.shape[0]
    act = jnp.tanh if activation == 'tanh' else jax.nn.relu
    Hs = jnp.zeros((B, Cout, H, W), jnp.float32)
    Cs = jnp.zeros((B, Cout, H, W), jnp.float32)
    w = conv_weight.astype(matmul_dtype)
    b = conv_bias.astype(matmul_dtype).astype(jnp.float32)
    outs = []
    for t in range(T):
        inp = jnp.concatenate([X[:, :, t], Hs], axis=1).astype(matmul_dtype)
        conv = jax.lax.conv_general_dilated(
            inp, w, (1, 1), [(padding, padding)] * 2,
            dimension_numbers=('NCHW', 'OIHW', 'NCHW'),
            preferred_element_type=jnp.float32,
            precision=jax.lax.Precision.HIGHEST)
        conv = conv + b[None, :, None, None]
        i_c, f_c, g_c, o_c = jnp.split(conv, 4, axis=1)
        ig = jax.nn.sigmoid(i_c + W_ci[None] * Cs)
        fg = jax.nn.sigmoid(f_c + W_cf[None] * Cs)
        Cs = fg * Cs + ig * act(g_c)
        og = jax.nn.sigmoid(o_c + W_co[None] * Cs)
        Hs = og * act(Cs)
        outs.append(Hs)
    return jnp.stack(outs, axis=2)


if __name__ == "__main__":
    B, Cin, Cout, T, H, W = 2, 4, 16, 4, 16, 16
    k, padding = 3, 1
    activation = 'tanh'

    key = jax.random.PRNGKey(0)
    kx, kw, kb, k1, k2, k3 = jax.random.split(key, 6)

    X = jax.random.normal(kx, (B, Cin, T, H, W), jnp.float32)
    # nn.Parameter(torch.Tensor(...)) is uninitialized in the module; draw
    # deterministic synthetic parameters with the right shapes instead.
    conv_weight = 0.1 * jax.random.normal(kw, (4 * Cout, Cin + Cout, k, k),
                                          jnp.float32)
    conv_bias = 0.1 * jax.random.normal(kb, (4 * Cout,), jnp.float32)
    W_ci = 0.1 * jax.random.normal(k1, (Cout, H, W), jnp.float32)
    W_cf = 0.1 * jax.random.normal(k2, (Cout, H, W), jnp.float32)
    W_co = 0.1 * jax.random.normal(k3, (Cout, H, W), jnp.float32)

    out = convlstm_pallas(X, conv_weight, conv_bias, W_ci, W_cf, W_co,
                          padding=padding, activation=activation)
    out = jax.block_until_ready(out)
    assert out.shape == (B, Cout, T, H, W)

    # (1) Algorithm check against a reference using the same bf16-input /
    #     f32-accumulate matmul policy (only accumulation order & the
    #     tanh-form sigmoid differ).
    ref_bf16 = convlstm_ref(X, conv_weight, conv_bias, W_ci, W_cf, W_co,
                            padding=padding, activation=activation,
                            matmul_dtype=jnp.bfloat16)
    assert jnp.allclose(out, ref_bf16, atol=2e-3, rtol=2e-3), (
        float(jnp.max(jnp.abs(out - ref_bf16))))

    # (2) Fidelity check against the full-f32 module semantics (bf16 matmul
    #     inputs only shift low-order bits; gates are sigmoid/tanh-squashed).
    ref_f32 = convlstm_ref(X, conv_weight, conv_bias, W_ci, W_cf, W_co,
                           padding=padding, activation=activation,
                           matmul_dtype=jnp.float32)
    assert jnp.allclose(out, ref_f32, atol=3e-2, rtol=3e-2), (
        float(jnp.max(jnp.abs(out - ref_f32))))

    print("KERNEL_OK")
</pallas_src>

<mosaic_0001>
module attributes {stable_mosaic.version = 11 : i64} {
  func.func @_convlstm_kernel(%arg0: i32, %arg1: i32, %arg2: memref<1x1x48x512xbf16, #tpu.memory_space<vmem>>, %arg3: memref<64x48xbf16, #tpu.memory_space<vmem>>, %arg4: memref<64x144xbf16, #tpu.memory_space<vmem>>, %arg5: memref<48x512xf32, #tpu.memory_space<vmem>>, %arg6: memref<9x16x512xf32, #tpu.memory_space<vmem>>, %arg7: memref<1x1x16x512xf32, #tpu.memory_space<vmem>>, %arg8: memref<144x512xbf16, #tpu.memory_space<vmem>>, %arg9: memref<16x512xf32, #tpu.memory_space<vmem>>) attributes {dimension_semantics = [#tpu.dimension_semantics<parallel>, #tpu.dimension_semantics<arbitrary>], iteration_bounds = array<i64: 1, 4>, scalar_prefetch = 0 : i64, scratch_operands = 2 : i64, tpu.core_type = #tpu.core_type<tc>, window_params = [{transform_indices = @transform_0, window_bounds = array<i64: 1, 1, 48, 512>}, {pipeline_mode = #tpu.pipeline_mode<synchronous>, transform_indices = @transform_1, window_bounds = array<i64: 64, 48>}, {pipeline_mode = #tpu.pipeline_mode<synchronous>, transform_indices = @transform_2, window_bounds = array<i64: 64, 144>}, {pipeline_mode = #tpu.pipeline_mode<synchronous>, transform_indices = @transform_3, window_bounds = array<i64: 48, 512>}, {pipeline_mode = #tpu.pipeline_mode<synchronous>, transform_indices = @transform_4, window_bounds = array<i64: 9, 16, 512>}, {transform_indices = @transform_5, window_bounds = array<i64: 1, 1, 16, 512>}]} {
    %c0_i32 = arith.constant 0 : i32
    %0 = arith.cmpi eq, %arg1, %c0_i32 : i32
    %1 = arith.extui %0 : i1 to i32
    %c0_i32_0 = arith.constant 0 : i32
    %2 = arith.cmpi ne, %1, %c0_i32_0 : i32
    scf.if %2 {
      %cst_33 = arith.constant 0.000000e+00 : bf16
      %60 = vector.broadcast %cst_33 : bf16 to vector<144x512xbf16>
      %c0_34 = arith.constant 0 : index
      %c0_35 = arith.constant 0 : index
      %61 = vector.load %arg8[%c0_34, %c0_35] : memref<144x512xbf16, #tpu.memory_space<vmem>>, vector<144x512xbf16>
      tpu.vector_store %arg8[%c0_34, %c0_35], %60 {strides = array<i32>} : memref<144x512xbf16, #tpu.memory_space<vmem>>, vector<144x512xbf16>,
      %cst_36 = arith.constant 0.000000e+00 : f32
      %62 = vector.broadcast %cst_36 : f32 to vector<16x512xf32>
      %c0_37 = arith.constant 0 : index
      %c0_38 = arith.constant 0 : index
      %63 = vector.load %arg9[%c0_37, %c0_38] : memref<16x512xf32, #tpu.memory_space<vmem>>, vector<16x512xf32>
      tpu.vector_store %arg9[%c0_37, %c0_38], %62 {strides = array<i32>} : memref<16x512xf32, #tpu.memory_space<vmem>>, vector<16x512xf32>,
    } else {
    }
    %c0 = arith.constant 0 : index
    %c0_1 = arith.constant 0 : index
    %3 = vector.load %arg3[%c0, %c0_1] : memref<64x48xbf16, #tpu.memory_space<vmem>>, vector<64x48xbf16>
    %c0_2 = arith.constant 0 : index
    %c0_3 = arith.constant 0 : index
    %c0_4 = arith.constant 0 : index
    %c0_5 = arith.constant 0 : index
    %4 = vector.load %arg2[%c0_2, %c0_3, %c0_4, %c0_5] : memref<1x1x48x512xbf16, #tpu.memory_space<vmem>>, vector<1x1x48x512xbf16>
    %5 = vector.shape_cast %4 : vector<1x1x48x512xbf16> to vector<48x512xbf16>
    %cst = arith.constant dense<0.000000e+00> : vector<64x512xf32>
    %6 = tpu.matmul %3, %5, %cst {dimension_numbers = #tpu.dot_dimension_numbers<[1], [0], [0], [1], [0, 0, 1, 1], [], []>} : vector<64x48xbf16>, vector<48x512xbf16>, vector<64x512xf32> -> vector<64x512xf32>
    %c0_6 = arith.constant 0 : index
    %c0_7 = arith.constant 0 : index
    %7 = vector.load %arg4[%c0_6, %c0_7] : memref<64x144xbf16, #tpu.memory_space<vmem>>, vector<64x144xbf16>
    %c0_8 = arith.constant 0 : index
    %c0_9 = arith.constant 0 : index
    %8 = vector.load %arg8[%c0_8, %c0_9] : memref<144x512xbf16, #tpu.memory_space<vmem>>, vector<144x512xbf16>
    %cst_10 = arith.constant dense<0.000000e+00> : vector<64x512xf32>
    %9 = tpu.matmul %7, %8, %cst_10 {dimension_numbers = #tpu.dot_dimension_numbers<[1], [0], [0], [1], [0, 0, 1, 1], [], []>} : vector<64x144xbf16>, vector<144x512xbf16>, vector<64x512xf32> -> vector<64x512xf32>
    %10 = arith.addf %6, %9 : vector<64x512xf32>
    %11 = vector.extract_strided_slice %10 {offsets = [0, 0], sizes = [16, 512], strides = [1, 1]} : vector<64x512xf32> to vector<16x512xf32>
    %12 = vector.extract_strided_slice %10 {offsets = [16, 0], sizes = [16, 512], strides = [1, 1]} : vector<64x512xf32> to vector<16x512xf32>
    %13 = vector.extract_strided_slice %10 {offsets = [32, 0], sizes = [16, 512], strides = [1, 1]} : vector<64x512xf32> to vector<16x512xf32>
    %14 = vector.extract_strided_slice %10 {offsets = [48, 0], sizes = [16, 512], strides = [1, 1]} : vector<64x512xf32> to vector<16x512xf32>
    %c0_11 = arith.constant 0 : index
    %c0_12 = arith.constant 0 : index
    %15 = vector.load %arg5[%c0_11, %c0_12] : memref<48x512xf32, #tpu.memory_space<vmem>>, vector<16x512xf32>
    %c16 = arith.constant 16 : index
    %c0_13 = arith.constant 0 : index
    %16 = vector.load %arg5[%c16, %c0_13] : memref<48x512xf32, #tpu.memory_space<vmem>>, vector<16x512xf32>
    %c32 = arith.constant 32 : index
    %c0_14 = arith.constant 0 : index
    %17 = vector.load %arg5[%c32, %c0_14] : memref<48x512xf32, #tpu.memory_space<vmem>>, vector<16x512xf32>
    %c0_15 = arith.constant 0 : index
    %c0_16 = arith.constant 0 : index
    %18 = vector.load %arg9[%c0_15, %c0_16] : memref<16x512xf32, #tpu.memory_space<vmem>>, vector<16x512xf32>
    %19 = arith.mulf %15, %18 : vector<16x512xf32>
    %20 = arith.addf %11, %19 : vector<16x512xf32>
    %cst_17 = arith.constant 5.000000e-01 : f32
    %21 = vector.broadcast %cst_17 : f32 to vector<16x512xf32>
    %22 = arith.mulf %21, %20 : vector<16x512xf32>
    %23 = math.tanh %22 : vector<16x512xf32>
    %cst_18 = arith.constant 5.000000e-01 : f32
    %24 = vector.broadcast %cst_18 : f32 to vector<16x512xf32>
    %25 = arith.mulf %24, %23 : vector<16x512xf32>
    %cst_19 = arith.constant 5.000000e-01 : f32
    %26 = vector.broadcast %cst_19 : f32 to vector<16x512xf32>
    %27 = arith.addf %25, %26 : vector<16x512xf32>
    %28 = arith.mulf %16, %18 : vector<16x512xf32>
    %29 = arith.addf %12, %28 : vector<16x512xf32>
    %cst_20 = arith.constant 5.000000e-01 : f32
    %30 = vector.broadcast %cst_20 : f32 to vector<16x512xf32>
    %31 = arith.mulf %30, %29 : vector<16x512xf32>
    %32 = math.tanh %31 : vector<16x512xf32>
    %cst_21 = arith.constant 5.000000e-01 : f32
    %33 = vector.broadcast %cst_21 : f32 to vector<16x512xf32>
    %34 = arith.mulf %33, %32 : vector<16x512xf32>
    %cst_22 = arith.constant 5.000000e-01 : f32
    %35 = vector.broadcast %cst_22 : f32 to vector<16x512xf32>
    %36 = arith.addf %34, %35 : vector<16x512xf32>
    %37 = arith.mulf %36, %18 : vector<16x512xf32>
    %38 = math.tanh %13 : vector<16x512xf32>
    %39 = arith.mulf %27, %38 : vector<16x512xf32>
    %40 = arith.addf %37, %39 : vector<16x512xf32>
    %41 = arith.mulf %17, %40 : vector<16x512xf32>
    %42 = arith.addf %14, %41 : vector<16x512xf32>
    %cst_23 = arith.constant 5.000000e-01 : f32
    %43 = vector.broadcast %cst_23 : f32 to vector<16x512xf32>
    %44 = arith.mulf %43, %42 : vector<16x512xf32>
    %45 = math.tanh %44 : vector<16x512xf32>
    %cst_24 = arith.constant 5.000000e-01 : f32
    %46 = vector.broadcast %cst_24 : f32 to vector<16x512xf32>
    %47 = arith.mulf %46, %45 : vector<16x512xf32>
    %cst_25 = arith.constant 5.000000e-01 : f32
    %48 = vector.broadcast %cst_25 : f32 to vector<16x512xf32>
    %49 = arith.addf %47, %48 : vector<16x512xf32>
    %50 = math.tanh %40 : vector<16x512xf32>
    %51 = arith.mulf %49, %50 : vector<16x512xf32>
    %c0_26 = arith.constant 0 : index
    %c0_27 = arith.constant 0 : index
    %52 = vector.load %arg9[%c0_26, %c0_27] : memref<16x512xf32, #tpu.memory_space<vmem>>, vector<16x512xf32>
    tpu.vector_store %arg9[%c0_26, %c0_27], %40 {strides = array<i32>} : memref<16x512xf32, #tpu.memory_space<vmem>>, vector<16x512xf32>,
    %c0_28 = arith.constant 0 : index
    %c0_29 = arith.constant 0 : index
    %c0_30 = arith.constant 0 : index
    %c0_31 = arith.constant 0 : index
    %53 = vector.load %arg7[%c0_28, %c0_29, %c0_30, %c0_31] : memref<1x1x16x512xf32, #tpu.memory_space<vmem>>, vector<1x1x16x512xf32>
    %54 = vector.shape_cast %53 : vector<1x1x16x512xf32> to vector<16x512xf32>
    %55 = vector.shape_cast %51 : vector<16x512xf32> to vector<1x1x16x512xf32>
    tpu.vector_store %arg7[%c0_28, %c0_29, %c0_30, %c0_31], %55 {strides = array<i32>} : memref<1x1x16x512xf32, #tpu.memory_space<vmem>>, vector<1x1x16x512xf32>,
    %c1_i32 = arith.constant 1 : i32
    %56 = arith.addi %arg1, %c1_i32 : i32
    %c4_i32 = arith.constant 4 : i32
    %57 = arith.cmpi slt, %56, %c4_i32 : i32
    %58 = arith.extui %57 : i1 to i32
    %c0_i32_32 = arith.constant 0 : i32
    %59 = arith.cmpi ne, %58, %c0_i32_32 : i32
    scf.if %59 {
      %c17_i32 = arith.constant 17 : i32
      %60 = tpu.dynamic_rotate %51 by %c17_i32 dim 1 : vector<16x512xf32>, i32 -> vector<16x512xf32>
      %c0_33 = arith.constant 0 : index
      %c0_34 = arith.constant 0 : index
      %c0_35 = arith.constant 0 : index
      %61 = vector.load %arg6[%c0_33, %c0_34, %c0_35] : memref<9x16x512xf32, #tpu.memory_space<vmem>>, vector<1x16x512xf32>
      %62 = vector.shape_cast %61 : vector<1x16x512xf32> to vector<16x512xf32>
      %63 = arith.mulf %60, %62 : vector<16x512xf32>
      %64 = arith.truncf %63 : vector<16x512xf32> to vector<16x512xbf16>
      %c0_36 = arith.constant 0 : index
      %c0_37 = arith.constant 0 : index
      %65 = vector.load %arg8[%c0_36, %c0_37] : memref<144x512xbf16, #tpu.memory_space<vmem>>, vector<16x512xbf16>
      tpu.vector_store %arg8[%c0_36, %c0_37], %64 {strides = array<i32>} : memref<144x512xbf16, #tpu.memory_space<vmem>>, vector<16x512xbf16>,
      %c16_i32 = arith.constant 16 : i32
      %66 = tpu.dynamic_rotate %51 by %c16_i32 dim 1 : vector<16x512xf32>, i32 -> vector<16x512xf32>
      %c1 = arith.constant 1 : index
      %c0_38 = arith.constant 0 : index
      %c0_39 = arith.constant 0 : index
      %67 = vector.load %arg6[%c1, %c0_38, %c0_39] : memref<9x16x512xf32, #tpu.memory_space<vmem>>, vector<1x16x512xf32>
      %68 = vector.shape_cast %67 : vector<1x16x512xf32> to vector<16x512xf32>
      %69 = arith.mulf %66, %68 : vector<16x512xf32>
      %70 = arith.truncf %69 : vector<16x512xf32> to vector<16x512xbf16>
      %c16_40 = arith.constant 16 : index
      %c0_41 = arith.constant 0 : index
      %71 = vector.load %arg8[%c16_40, %c0_41] : memref<144x512xbf16, #tpu.memory_space<vmem>>, vector<16x512xbf16>
      tpu.vector_store %arg8[%c16_40, %c0_41], %70 {strides = array<i32>} : memref<144x512xbf16, #tpu.memory_space<vmem>>, vector<16x512xbf16>,
      %c15_i32 = arith.constant 15 : i32
      %72 = tpu.dynamic_rotate %51 by %c15_i32 dim 1 : vector<16x512xf32>, i32 -> vector<16x512xf32>
      %c2 = arith.constant 2 : index
      %c0_42 = arith.constant 0 : index
      %c0_43 = arith.constant 0 : index
      %73 = vector.load %arg6[%c2, %c0_42, %c0_43] : memref<9x16x512xf32, #tpu.memory_space<vmem>>, vector<1x16x512xf32>
      %74 = vector.shape_cast %73 : vector<1x16x512xf32> to vector<16x512xf32>
      %75 = arith.mulf %72, %74 : vector<16x512xf32>
      %76 = arith.truncf %75 : vector<16x512xf32> to vector<16x512xbf16>
      %c32_44 = arith.constant 32 : index
      %c0_45 = arith.constant 0 : index
      %77 = vector.load %arg8[%c32_44, %c0_45] : memref<144x512xbf16, #tpu.memory_space<vmem>>, vector<16x512xbf16>
      tpu.vector_store %arg8[%c32_44, %c0_45], %76 {strides = array<i32>} : memref<144x512xbf16, #tpu.memory_space<vmem>>, vector<16x512xbf16>,
      %c1_i32_46 = arith.constant 1 : i32
      %78 = tpu.dynamic_rotate %51 by %c1_i32_46 dim 1 : vector<16x512xf32>, i32 -> vector<16x512xf32>
      %c3 = arith.constant 3 : index
      %c0_47 = arith.constant 0 : index
      %c0_48 = arith.constant 0 : index
      %79 = vector.load %arg6[%c3, %c0_47, %c0_48] : memref<9x16x512xf32, #tpu.memory_space<vmem>>, vector<1x16x512xf32>
      %80 = vector.shape_cast %79 : vector<1x16x512xf32> to vector<16x512xf32>
      %81 = arith.mulf %78, %80 : vector<16x512xf32>
      %82 = arith.truncf %81 : vector<16x512xf32> to vector<16x512xbf16>
      %c48 = arith.constant 48 : index
      %c0_49 = arith.constant 0 : index
      %83 = vector.load %arg8[%c48, %c0_49] : memref<144x512xbf16, #tpu.memory_space<vmem>>, vector<16x512xbf16>
      tpu.vector_store %arg8[%c48, %c0_49], %82 {strides = array<i32>} : memref<144x512xbf16, #tpu.memory_space<vmem>>, vector<16x512xbf16>,
      %c4 = arith.constant 4 : index
      %c0_50 = arith.constant 0 : index
      %c0_51 = arith.constant 0 : index
      %84 = vector.load %arg6[%c4, %c0_50, %c0_51] : memref<9x16x512xf32, #tpu.memory_space<vmem>>, vector<1x16x512xf32>
      %85 = vector.shape_cast %84 : vector<1x16x512xf32> to vector<16x512xf32>
      %86 = arith.mulf %51, %85 : vector<16x512xf32>
      %87 = arith.truncf %86 : vector<16x512xf32> to vector<16x512xbf16>
      %c64 = arith.constant 64 : index
      %c0_52 = arith.constant 0 : index
      %88 = vector.load %arg8[%c64, %c0_52] : memref<144x512xbf16, #tpu.memory_space<vmem>>, vector<16x512xbf16>
      tpu.vector_store %arg8[%c64, %c0_52], %87 {strides = array<i32>} : memref<144x512xbf16, #tpu.memory_space<vmem>>, vector<16x512xbf16>,
      %c511_i32 = arith.constant 511 : i32
      %89 = tpu.dynamic_rotate %51 by %c511_i32 dim 1 : vector<16x512xf32>, i32 -> vector<16x512xf32>
      %c5 = arith.constant 5 : index
      %c0_53 = arith.constant 0 : index
      %c0_54 = arith.constant 0 : index
      %90 = vector.load %arg6[%c5, %c0_53, %c0_54] : memref<9x16x512xf32, #tpu.memory_space<vmem>>, vector<1x16x512xf32>
      %91 = vector.shape_cast %90 : vector<1x16x512xf32> to vector<16x512xf32>
      %92 = arith.mulf %89, %91 : vector<16x512xf32>
      %93 = arith.truncf %92 : vector<16x512xf32> to vector<16x512xbf16>
      %c80 = arith.constant 80 : index
      %c0_55 = arith.constant 0 : index
      %94 = vector.load %arg8[%c80, %c0_55] : memref<144x512xbf16, #tpu.memory_space<vmem>>, vector<16x512xbf16>
      tpu.vector_store %arg8[%c80, %c0_55], %93 {strides = array<i32>} : memref<144x512xbf16, #tpu.memory_space<vmem>>, vector<16x512xbf16>,
      %c497_i32 = arith.constant 497 : i32
      %95 = tpu.dynamic_rotate %51 by %c497_i32 dim 1 : vector<16x512xf32>, i32 -> vector<16x512xf32>
      %c6 = arith.constant 6 : index
      %c0_56 = arith.constant 0 : index
      %c0_57 = arith.constant 0 : index
      %96 = vector.load %arg6[%c6, %c0_56, %c0_57] : memref<9x16x512xf32, #tpu.memory_space<vmem>>, vector<1x16x512xf32>
      %97 = vector.shape_cast %96 : vector<1x16x512xf32> to vector<16x512xf32>
      %98 = arith.mulf %95, %97 : vector<16x512xf32>
      %99 = arith.truncf %98 : vector<16x512xf32> to vector<16x512xbf16>
      %c96 = arith.constant 96 : index
      %c0_58 = arith.constant 0 : index
      %100 = vector.load %arg8[%c96, %c0_58] : memref<144x512xbf16, #tpu.memory_space<vmem>>, vector<16x512xbf16>
      tpu.vector_store %arg8[%c96, %c0_58], %99 {strides = array<i32>} : memref<144x512xbf16, #tpu.memory_space<vmem>>, vector<16x512xbf16>,
      %c496_i32 = arith.constant 496 : i32
      %101 = tpu.dynamic_rotate %51 by %c496_i32 dim 1 : vector<16x512xf32>, i32 -> vector<16x512xf32>
      %c7 = arith.constant 7 : index
      %c0_59 = arith.constant 0 : index
      %c0_60 = arith.constant 0 : index
      %102 = vector.load %arg6[%c7, %c0_59, %c0_60] : memref<9x16x512xf32, #tpu.memory_space<vmem>>, vector<1x16x512xf32>
      %103 = vector.shape_cast %102 : vector<1x16x512xf32> to vector<16x512xf32>
      %104 = arith.mulf %101, %103 : vector<16x512xf32>
      %105 = arith.truncf %104 : vector<16x512xf32> to vector<16x512xbf16>
      %c112 = arith.constant 112 : index
      %c0_61 = arith.constant 0 : index
      %106 = vector.load %arg8[%c112, %c0_61] : memref<144x512xbf16, #tpu.memory_space<vmem>>, vector<16x512xbf16>
      tpu.vector_store %arg8[%c112, %c0_61], %105 {strides = array<i32>} : memref<144x512xbf16, #tpu.memory_space<vmem>>, vector<16x512xbf16>,
      %c495_i32 = arith.constant 495 : i32
      %107 = tpu.dynamic_rotate %51 by %c495_i32 dim 1 : vector<16x512xf32>, i32 -> vector<16x512xf32>
      %c8 = arith.constant 8 : index
      %c0_62 = arith.constant 0 : index
      %c0_63 = arith.constant 0 : index
      %108 = vector.load %arg6[%c8, %c0_62, %c0_63] : memref<9x16x512xf32, #tpu.memory_space<vmem>>, vector<1x16x512xf32>
      %109 = vector.shape_cast %108 : vector<1x16x512xf32> to vector<16x512xf32>
      %110 = arith.mulf %107, %109 : vector<16x512xf32>
      %111 = arith.truncf %110 : vector<16x512xf32> to vector<16x512xbf16>
      %c128 = arith.constant 128 : index
      %c0_64 = arith.constant 0 : index
      %112 = vector.load %arg8[%c128, %c0_64] : memref<144x512xbf16, #tpu.memory_space<vmem>>, vector<16x512xbf16>
      tpu.vector_store %arg8[%c128, %c0_64], %111 {strides = array<i32>} : memref<144x512xbf16, #tpu.memory_space<vmem>>, vector<16x512xbf16>,
    } else {
    }
    return
  }
  func.func @transform_0(%arg0: i32, %arg1: i32) -> (i32, i32, i32, i32) {
    %c0_i32 = arith.constant 0 : i32
    %c0_i32_0 = arith.constant 0 : i32
    %c0_i32_1 = arith.constant 0 : i32
    return %arg0, %arg1, %c0_i32, %c0_i32_0 : i32, i32, i32, i32
  }
  func.func @transform_1(%arg0: i32, %arg1: i32) -> (i32, i32) {
    %c0_i32 = arith.constant 0 : i32
    %c0_i32_0 = arith.constant 0 : i32
    %c0_i32_1 = arith.constant 0 : i32
    return %c0_i32, %c0_i32_0 : i32, i32
  }
  func.func @transform_2(%arg0: i32, %arg1: i32) -> (i32, i32) {
    %c0_i32 = arith.constant 0 : i32
    %c0_i32_0 = arith.constant 0 : i32
    %c0_i32_1 = arith.constant 0 : i32
    return %c0_i32, %c0_i32_0 : i32, i32
  }
  func.func @transform_3(%arg0: i32, %arg1: i32) -> (i32, i32) {
    %c0_i32 = arith.constant 0 : i32
    %c0_i32_0 = arith.constant 0 : i32
    %c0_i32_1 = arith.constant 0 : i32
    return %c0_i32, %c0_i32_0 : i32, i32
  }
  func.func @transform_4(%arg0: i32, %arg1: i32) -> (i32, i32, i32) {
    %c0_i32 = arith.constant 0 : i32
    %c0_i32_0 = arith.constant 0 : i32
    %c0_i32_1 = arith.constant 0 : i32
    %c0_i32_2 = arith.constant 0 : i32
    return %c0_i32, %c0_i32_0, %c0_i32_1 : i32, i32, i32
  }
  func.func @transform_5(%arg0: i32, %arg1: i32) -> (i32, i32, i32, i32) {
    %c0_i32 = arith.constant 0 : i32
    %c0_i32_0 = arith.constant 0 : i32
    %c0_i32_1 = arith.constant 0 : i32
    return %arg0, %arg1, %c0_i32, %c0_i32_0 : i32, i32, i32, i32
  }
}

</mosaic_0001>

<llo_original>
// kernel: tpu_custom_call.1
$region0: #{tpu_custom_call.1}
  #allocation0 [shape = 'u32[]', space=smem, size = 0x4, offset = 0x4, fixed_abs, tag = 'smem constant byte address 0x4 - core index']
  #allocation1 [shape = 'u32[72,128]{1,0:T(1,128)}', space=vmem, size = 0x9000, scoped, tag = 'internal scratch']
  #allocation2 [shape = 'bf16[144,512]{1,0:T(8,128)(2,1)}', space=vmem, size = 0x24000, scoped, tag = 'scratch operand']
  #allocation3 [shape = 'f32[16,512]{1,0:T(8,128)}', space=vmem, size = 0x8000, scoped, tag = 'scratch operand']
  %s0 = inlined_call_operand.hbm [shape: bf16[1,4,48,512], index: 0, kind: input, shape index: {}]
  %s1 = inlined_call_operand.vmem [shape: bf16[64,48], index: 1, kind: input, shape index: {}]
  %s2 = inlined_call_operand.hbm [shape: bf16[64,144], index: 2, kind: input, shape index: {}]
  %s3 = inlined_call_operand.hbm [shape: f32[48,512], index: 3, kind: input, shape index: {}]
  %s4 = inlined_call_operand.hbm [shape: f32[9,16,512], index: 4, kind: input, shape index: {}]
  %s5 = inlined_call_operand.hbm [shape: f32[1,4,16,512], index: 5, kind: output, shape index: {}]
  %s6 = sld [smem:[#allocation0]]
  $region77: #{tpu_custom_call.1} parent=0
    _
  %s8 = ssub.s32 1, %s6
  %s9 = scalar_select 0, %s8, %s6
  $region1: #{tpu_custom_call.1} parent=0
    #allocation4 [shape = 'u8[98304]{0}', space=vmem, size = 0x18000, scoped, tag = 'input window, operand 0']
    #allocation5 [shape = 's32[2]{0}', space=sflag, size = 0x8, scoped, tag = 'scoped memory for tpu_custom_call.1']
    #allocation6 [shape = 's32[2]{0}', space=sflag, size = 0x8, scoped, tag = 'scoped memory for tpu_custom_call.1']
    #allocation7 [shape = 'u8[32768]{0}', space=vmem, size = 0x8000, scoped, tag = 'input window, operand 2, single buffered']
    #allocation8 [shape = 's32[1]{0}', space=sflag, size = 0x4, scoped, tag = 'scoped memory for tpu_custom_call.1']
    #allocation9 [shape = 'u8[98304]{0}', space=vmem, size = 0x18000, scoped, tag = 'input window, operand 3, single buffered']
    #allocation10 [shape = 'u8[294912]{0}', space=vmem, size = 0x48000, scoped, tag = 'input window, operand 4, single buffered']
    #allocation11 [shape = 's32[1]{0}', space=sflag, size = 0x4, scoped, tag = 'scoped memory for tpu_custom_call.1']
    #allocation12 [shape = 'u8[65536]{0}', space=vmem, size = 0x10000, scoped, tag = 'output window, operand 0']
    %10 = vsyncpa [#allocation5], 0
    %s11 = scalar_lea.sflag [#allocation5], 1
    %12 = vsyncpa %s11, 0
    %13 = vsyncpa [#allocation8], 0
    %14 = vsyncpa [#allocation11], 0
    %15 = vsyncpa [#allocation6], 0
    %s16 = scalar_lea.sflag [#allocation6], 1
    %17 = vsyncpa %s16, 0
    loop: start=0, step=1, limit=6
    $region2: #{tpu_custom_call.1} parent=1 // loop_pre_header
      _
    $region3: #{tpu_custom_call.1} parent=1 // loop_header
      %s19 = sphi 0, %s23
      %p20 = scmp.ge.s32.totalorder %s19, 6
      %s26 = sphi 0, %s38
      %s27 = sphi 0, %s34
      %s28 = sphi 0, %s26
      %s29 = sphi 0, %s27
      %s30 = sphi 0, %s28
      %s31 = sphi 0, %s29
      %s43 = sphi 0, %s45
      %s46 = sphi 0, %s43
      %s47 = sphi 0, %s46
      %s63 = sphi 0, %s47
      %s67 = sphi 0, %s67
      %s69 = sphi 0, %s67
      %s70 = sphi 0, %s69
      %s84 = sphi 0, %s70
      %s88 = sphi 0, %s88
      %s90 = sphi 0, %s88
      %s91 = sphi 0, %s90
      %s105 = sphi 0, %s91
      %s109 = sphi 0, %s109
      %s111 = sphi 0, %s109
      %s112 = sphi 0, %s111
      %s126 = sphi 0, %s112
      %s130 = sphi 0, %s130
      %s132 = sphi 0, %s130
      %s133 = sphi 0, %s132
      %s147 = sphi 0, %s133
      %s155 = sphi 0, %s157
      %s158 = sphi 0, %s155
      %s159 = sphi 0, %s158
      %s175 = sphi 0, %s159
    $region4: #{tpu_custom_call.1} parent=1 // loop_header_branch
      %22 = sbr.rel (%p20) target = $region8
    $region5: #{tpu_custom_call.1} parent=1 // loop_body
      %s24 = ssub.s32 %s19, 1
      %s25 = ssub.s32 %s19, 2
      %s32 = sadd.s32 1, %s27
      %p33 = scmp.ge.s32.totalorder %s32, 4
      %s34 = scalar_select %p33, 0, %s32
      %s35 = sadd.s32 1, %s26
      %s36 = scalar_select %p33, %s35, %s26
      %p37 = scmp.ge.s32.totalorder %s36, 1
      %s38 = scalar_select %p37, 0, %s36
      %s39 = ssub.s32 %s26, %s38
      %s40 = ssub.s32 %s27, %s34
      %s41 = sor.u32 %s39, %s40
      %p42 = scmp.eq.s32.totalorder %s41, 0
      %s44 = sadd.s32 %s43, 1
      %s45 = scalar_select %p42, %s43, %s44
      %p48 = pneg %p42
      %p49 = scmp.eq.s32.totalorder %s19, 3
      %p50 = por %p48, %p49
      %p51 = scmp.ne.s32.totalorder %s43, %s46
      %p52 = scmp.eq.s32.totalorder %s19, 0
      %p53 = por %p51, %p52
      %p54 = scmp.ne.s32.totalorder %s43, %s46
      %p55 = scmp.eq.s32.totalorder %s24, 3
      %p56 = por %p54, %p55
      %p57 = scmp.ne.s32.totalorder %s46, %s47
      %p58 = scmp.eq.s32.totalorder %s24, 0
      %p59 = por %p57, %p58
      %p60 = scmp.ne.s32.totalorder %s46, %s47
      %p61 = scmp.eq.s32.totalorder %s25, 3
      %p62 = por %p60, %p61
      %p64 = scmp.ne.s32.totalorder %s47, %s63
      %p65 = scmp.eq.s32.totalorder %s25, 0
      %p66 = por %p64, %p65
      %s68 = sadd.s32 %s67, 1
      %p71 = scmp.eq.s32.totalorder %s19, 3
      %p72 = scmp.ne.s32.totalorder %s67, %s69
      %p73 = scmp.eq.s32.totalorder %s19, 0
      %p74 = por %p72, %p73
      %p75 = scmp.ne.s32.totalorder %s67, %s69
      %p76 = scmp.eq.s32.totalorder %s24, 3
      %p77 = por %p75, %p76
      %p78 = scmp.ne.s32.totalorder %s69, %s70
      %p79 = scmp.eq.s32.totalorder %s24, 0
      %p80 = por %p78, %p79
      %p81 = scmp.ne.s32.totalorder %s69, %s70
      %p82 = scmp.eq.s32.totalorder %s25, 3
      %p83 = por %p81, %p82
      %p85 = scmp.ne.s32.totalorder %s70, %s84
      %p86 = scmp.eq.s32.totalorder %s25, 0
      %p87 = por %p85, %p86
      %s89 = sadd.s32 %s88, 1
      %p92 = scmp.eq.s32.totalorder %s19, 3
      %p93 = scmp.ne.s32.totalorder %s88, %s90
      %p94 = scmp.eq.s32.totalorder %s19, 0
      %p95 = por %p93, %p94
      %p96 = scmp.ne.s32.totalorder %s88, %s90
      %p97 = scmp.eq.s32.totalorder %s24, 3
      %p98 = por %p96, %p97
      %p99 = scmp.ne.s32.totalorder %s90, %s91
      %p100 = scmp.eq.s32.totalorder %s24, 0
      %p101 = por %p99, %p100
      %p102 = scmp.ne.s32.totalorder %s90, %s91
      %p103 = scmp.eq.s32.totalorder %s25, 3
      %p104 = por %p102, %p103
      %p106 = scmp.ne.s32.totalorder %s91, %s105
      %p107 = scmp.eq.s32.totalorder %s25, 0
      %p108 = por %p106, %p107
      %s110 = sadd.s32 %s109, 1
      %p113 = scmp.eq.s32.totalorder %s19, 3
      %p114 = scmp.ne.s32.totalorder %s109, %s111
      %p115 = scmp.eq.s32.totalorder %s19, 0
      %p116 = por %p114, %p115
      %p117 = scmp.ne.s32.totalorder %s109, %s111
      %p118 = scmp.eq.s32.totalorder %s24, 3
      %p119 = por %p117, %p118
      %p120 = scmp.ne.s32.totalorder %s111, %s112
      %p121 = scmp.eq.s32.totalorder %s24, 0
      %p122 = por %p120, %p121
      %p123 = scmp.ne.s32.totalorder %s111, %s112
      %p124 = scmp.eq.s32.totalorder %s25, 3
      %p125 = por %p123, %p124
      %p127 = scmp.ne.s32.totalorder %s112, %s126
      %p128 = scmp.eq.s32.totalorder %s25, 0
      %p129 = por %p127, %p128
      %s131 = sadd.s32 %s130, 1
      %p134 = scmp.eq.s32.totalorder %s19, 3
      %p135 = scmp.ne.s32.totalorder %s130, %s132
      %p136 = scmp.eq.s32.totalorder %s19, 0
      %p137 = por %p135, %p136
      %p138 = scmp.ne.s32.totalorder %s130, %s132
      %p139 = scmp.eq.s32.totalorder %s24, 3
      %p140 = por %p138, %p139
      %p141 = scmp.ne.s32.totalorder %s132, %s133
      %p142 = scmp.eq.s32.totalorder %s24, 0
      %p143 = por %p141, %p142
      %p144 = scmp.ne.s32.totalorder %s132, %s133
      %p145 = scmp.eq.s32.totalorder %s25, 3
      %p146 = por %p144, %p145
      %p148 = scmp.ne.s32.totalorder %s133, %s147
      %p149 = scmp.eq.s32.totalorder %s25, 0
      %p150 = por %p148, %p149
      %s151 = ssub.s32 %s26, %s38
      %s152 = ssub.s32 %s27, %s34
      %s153 = sor.u32 %s151, %s152
      %p154 = scmp.eq.s32.totalorder %s153, 0
      %s156 = sadd.s32 %s155, 1
      %s157 = scalar_select %p154, %s155, %s156
      %p160 = pneg %p154
      %p161 = scmp.eq.s32.totalorder %s19, 3
      %p162 = por %p160, %p161
      %p163 = scmp.ne.s32.totalorder %s155, %s158
      %p164 = scmp.eq.s32.totalorder %s19, 0
      %p165 = por %p163, %p164
      %p166 = scmp.ne.s32.totalorder %s155, %s158
      %p167 = scmp.eq.s32.totalorder %s24, 3
      %p168 = por %p166, %p167
      %p169 = scmp.ne.s32.totalorder %s158, %s159
      %p170 = scmp.eq.s32.totalorder %s24, 0
      %p171 = por %p169, %p170
      %p172 = scmp.ne.s32.totalorder %s158, %s159
      %p173 = scmp.eq.s32.totalorder %s25, 3
      %p174 = por %p172, %p173
      %p176 = scmp.ne.s32.totalorder %s159, %s175
      %p177 = scmp.eq.s32.totalorder %s25, 0
      %p178 = por %p176, %p177
      %p179 = scmp.le.s32.totalorder 1, %s19
      %p180 = scmp.lt.s32.totalorder %s19, 5
      %p181 = pnand %p179, %p180
      %p182 = pneg %p181
      // Predicated region
      $region9: #{tpu_custom_call.1} parent=5 // pred_check
        _
      $region10: #{tpu_custom_call.1} parent=5 // pred_check_branch
        %184 = sbr.rel (%p181) target = $region12
      $region11: #{tpu_custom_call.1} parent=5 // pred_region
        %s185 = ssub.s32 %s19, 1
        // Predicated region
        $region13: #{tpu_custom_call.1} parent=11 // pred_check
          %p186 = pneg %p80
        $region14: #{tpu_custom_call.1} parent=11 // pred_check_branch
          %188 = sbr.rel (%p186) target = $region16
        $region15: #{tpu_custom_call.1} parent=11 // pred_region
          _
        $region16: #{tpu_custom_call.1} parent=11 // pred_fallthru
          _
        // Predicated region
        $region17: #{tpu_custom_call.1} parent=11 // pred_check
          %p189 = pneg %p101
        $region18: #{tpu_custom_call.1} parent=11 // pred_check_branch
          %191 = sbr.rel (%p189) target = $region20
        $region19: #{tpu_custom_call.1} parent=11 // pred_region
          %193 = vsyncadd [#allocation8], 0
          %s194 = sshll.u32 %s2, 4
          %s195 = int_to_ptr.hbm [resolvable:$true] %s194
          %s196 = sshll.u32 [#allocation7], 4
          %s197 = int_to_ptr.vmem [resolvable:$true] %s196
          %202 = dma.hbm_to_vmem [thread:$0]  %s195, 1024, %s197, [#allocation8], 128, 128, 8
        $region20: #{tpu_custom_call.1} parent=11 // pred_fallthru
          _
        // Predicated region
        $region21: #{tpu_custom_call.1} parent=11 // pred_check
          %p203 = pneg %p122
        $region22: #{tpu_custom_call.1} parent=11 // pred_check_branch
          %205 = sbr.rel (%p203) target = $region24
        $region23: #{tpu_custom_call.1} parent=11 // pred_region
          %207 = vsyncadd [#allocation8], 0
          %s208 = sshll.u32 %s3, 4
          %s209 = int_to_ptr.hbm [resolvable:$true] %s208
          %s210 = sshll.u32 [#allocation9], 4
          %s211 = int_to_ptr.vmem [resolvable:$true] %s210
          %216 = dma.hbm_to_vmem [thread:$0]  %s209, 3072, %s211, [#allocation8], 512, 512, 32
        $region24: #{tpu_custom_call.1} parent=11 // pred_fallthru
          _
        // Predicated region
        $region25: #{tpu_custom_call.1} parent=11 // pred_check
          %p217 = pneg %p143
        $region26: #{tpu_custom_call.1} parent=11 // pred_check_branch
          %219 = sbr.rel (%p217) target = $region28
        $region27: #{tpu_custom_call.1} parent=11 // pred_region
          %221 = vsyncadd [#allocation11], 0
          %s222 = sshll.u32 %s4, 4
          %s223 = int_to_ptr.hbm [resolvable:$true] %s222
          %s224 = sshll.u32 [#allocation10], 4
          %s225 = int_to_ptr.vmem [resolvable:$true] %s224
          %230 = dma.hbm_to_vmem [thread:$0]  %s223, 9216, %s225, [#allocation11], 512, 512, 32
        $region28: #{tpu_custom_call.1} parent=11 // pred_fallthru
          _
      $region12: #{tpu_custom_call.1} parent=5 // pred_fallthru
        _
      %p231 = scmp.lt.s32.totalorder %s19, 4
      // Predicated region
      $region29: #{tpu_custom_call.1} parent=5 // pred_check
        %p232 = pneg %p231
      $region30: #{tpu_custom_call.1} parent=5 // pred_check_branch
        %234 = sbr.rel (%p232) target = $region32
      $region31: #{tpu_custom_call.1} parent=5 // pred_region
        // Predicated region
        $region33: #{tpu_custom_call.1} parent=31 // pred_check
          %p235 = pneg %p53
        $region34: #{tpu_custom_call.1} parent=31 // pred_check_branch
          %237 = sbr.rel (%p235) target = $region36
        $region35: #{tpu_custom_call.1} parent=31 // pred_region
          %s238 = sand.u32 %s43, 1
          %s239 = scalar_lea.sflag [#allocation5], %s238
          %s240 = sand.u32 %s43, 1
          %s241 = smul.addr %s240, 96
          %s242 = scalar_lea.vmem [#allocation4], %s241
          %244 = vsyncadd %s239, 0
          %s245 = smul.addr %s27, 24
          %s246 = smul.addr %s26, 96
          %s247 = sadd.s32 %s245, %s246
          %s248 = smul.addr %s247, 4
          %s249 = scalar_lea.hbm %s0, %s248
          %s250 = sshll.u32 %s249, 4
          %s251 = int_to_ptr.hbm [resolvable:$true] %s250
          %s252 = sshll.u32 %s242, 4
          %s253 = int_to_ptr.vmem [resolvable:$true] %s252
          %258 = dma.hbm_to_vmem [thread:$0]  %s251, 1536, %s253, %s239, 256, 256, 16
        $region36: #{tpu_custom_call.1} parent=31 // pred_fallthru
          _
      $region32: #{tpu_custom_call.1} parent=5 // pred_fallthru
        _
      %p259 = scmp.le.s32.totalorder 1, %s19
      %p260 = scmp.lt.s32.totalorder %s19, 5
      %p261 = pnand %p259, %p260
      %p262 = pneg %p261
      // Predicated region
      $region37: #{tpu_custom_call.1} parent=5 // pred_check
        _
      $region38: #{tpu_custom_call.1} parent=5 // pred_check_branch
        %264 = sbr.rel (%p261) target = $region40
      $region39: #{tpu_custom_call.1} parent=5 // pred_region
        %s265 = ssub.s32 %s19, 1
        %s266 = sand.u32 %s46, 1
        %s267 = scalar_lea.sflag [#allocation5], %s266
        %s268 = sand.u32 %s46, 1
        %s269 = smul.addr %s268, 96
        %s270 = scalar_lea.vmem [#allocation4], %s269
        // Predicated region
        $region41: #{tpu_custom_call.1} parent=39 // pred_check
          %p271 = pneg %p59
        $region42: #{tpu_custom_call.1} parent=39 // pred_check_branch
          %273 = sbr.rel (%p271) target = $region44
        $region43: #{tpu_custom_call.1} parent=39 // pred_region
          %275 = dma.done %s267, 1536
        $region44: #{tpu_custom_call.1} parent=39 // pred_fallthru
          _
        // Predicated region
        $region45: #{tpu_custom_call.1} parent=39 // pred_check
          %p276 = pneg %p101
        $region46: #{tpu_custom_call.1} parent=39 // pred_check_branch
          %278 = sbr.rel (%p276) target = $region48
        $region47: #{tpu_custom_call.1} parent=39 // pred_region
          %280 = dma.done [#allocation8], 1024
        $region48: #{tpu_custom_call.1} parent=39 // pred_fallthru
          _
        // Predicated region
        $region49: #{tpu_custom_call.1} parent=39 // pred_check
          %p281 = pneg %p122
        $region50: #{tpu_custom_call.1} parent=39 // pred_check_branch
          %283 = sbr.rel (%p281) target = $region52
        $region51: #{tpu_custom_call.1} parent=39 // pred_region
          %285 = dma.done [#allocation8], 3072
        $region52: #{tpu_custom_call.1} parent=39 // pred_fallthru
          _
        // Predicated region
        $region53: #{tpu_custom_call.1} parent=39 // pred_check
          %p286 = pneg %p143
        $region54: #{tpu_custom_call.1} parent=39 // pred_check_branch
          %288 = sbr.rel (%p286) target = $region56
        $region55: #{tpu_custom_call.1} parent=39 // pred_region
          %290 = dma.done [#allocation11], 9216
        $region56: #{tpu_custom_call.1} parent=39 // pred_fallthru
          _
        %s291 = sand.u32 %s46, 1
        %s292 = scalar_lea.sflag [#allocation5], %s291
        %s293 = sand.u32 %s46, 1
        %s294 = smul.addr %s293, 96
        %s295 = scalar_lea.vmem [#allocation4], %s294
        %p296 = pneg %p59
        %p297 = pneg %p56
        %p298 = pneg %p80
        %p299 = pneg %p77
        %p300 = pneg %p101
        %p301 = pneg %p98
        %p302 = pneg %p122
        %p303 = pneg %p119
        %p304 = pneg %p143
        %p305 = pneg %p140
        %p306 = pneg %p171
        %p307 = pneg %p168
        %s308 = sand.u32 %s158, 1
        %s309 = scalar_lea.sflag [#allocation6], %s308
        %s310 = sand.u32 %s158, 1
        %s311 = smul.addr %s310, 64
        %s312 = scalar_lea.vmem [#allocation12], %s311
        %p314 = scmp.eq.s32.totalorder %s29, 0
        // Predicated region
        $region57: #{tpu_custom_call.1} parent=39 // pred_check
          %p315 = pneg %p314
        $region58: #{tpu_custom_call.1} parent=39 // pred_check_branch
          %317 = sbr.rel (%p315) target = $region60
        $region59: #{tpu_custom_call.1} parent=39 // pred_region
          %318 = vst [vmem:[#allocation2] sm:$0xff] 0
          %319 = vst [vmem:[#allocation2 + $0x8] sm:$0xff] 0
          %320 = vst [vmem:[#allocation2 + $0x10] sm:$0xff] 0
          %321 = vst [vmem:[#allocation2 + $0x18] sm:$0xff] 0
          %322 = vst [vmem:[#allocation2 + $0x20] sm:$0xff] 0
          %323 = vst [vmem:[#allocation2 + $0x28] sm:$0xff] 0
          %324 = vst [vmem:[#allocation2 + $0x30] sm:$0xff] 0
          %325 = vst [vmem:[#allocation2 + $0x38] sm:$0xff] 0
          %326 = vst [vmem:[#allocation2 + $0x40] sm:$0xff] 0
          %327 = vst [vmem:[#allocation2 + $0x48] sm:$0xff] 0
          %328 = vst [vmem:[#allocation2 + $0x50] sm:$0xff] 0
          %329 = vst [vmem:[#allocation2 + $0x58] sm:$0xff] 0
          %330 = vst [vmem:[#allocation2 + $0x60] sm:$0xff] 0
          %331 = vst [vmem:[#allocation2 + $0x68] sm:$0xff] 0
          %332 = vst [vmem:[#allocation2 + $0x70] sm:$0xff] 0
          %333 = vst [vmem:[#allocation2 + $0x78] sm:$0xff] 0
          %334 = vst [vmem:[#allocation2 + $0x80] sm:$0xff] 0
          %335 = vst [vmem:[#allocation2 + $0x88] sm:$0xff] 0
          %336 = vst [vmem:[#allocation2 + $0x90] sm:$0xff] 0
          %337 = vst [vmem:[#allocation2 + $0x98] sm:$0xff] 0
          %338 = vst [vmem:[#allocation2 + $0xa0] sm:$0xff] 0
          %339 = vst [vmem:[#allocation2 + $0xa8] sm:$0xff] 0
          %340 = vst [vmem:[#allocation2 + $0xb0] sm:$0xff] 0
          %341 = vst [vmem:[#allocation2 + $0xb8] sm:$0xff] 0
          %342 = vst [vmem:[#allocation2 + $0xc0] sm:$0xff] 0
          %343 = vst [vmem:[#allocation2 + $0xc8] sm:$0xff] 0
          %344 = vst [vmem:[#allocation2 + $0xd0] sm:$0xff] 0
          %345 = vst [vmem:[#allocation2 + $0xd8] sm:$0xff] 0
          %346 = vst [vmem:[#allocation2 + $0xe0] sm:$0xff] 0
          %347 = vst [vmem:[#allocation2 + $0xe8] sm:$0xff] 0
          %348 = vst [vmem:[#allocation2 + $0xf0] sm:$0xff] 0
          %349 = vst [vmem:[#allocation2 + $0xf8] sm:$0xff] 0
          %350 = vst [vmem:[#allocation2 + $0x100] sm:$0xff] 0
          %351 = vst [vmem:[#allocation2 + $0x108] sm:$0xff] 0
          %352 = vst [vmem:[#allocation2 + $0x110] sm:$0xff] 0
          %353 = vst [vmem:[#allocation2 + $0x118] sm:$0xff] 0
          %354 = vst [vmem:[#allocation3] sm:$0xff] 0.0
          %355 = vst [vmem:[#allocation3 + $0x8] sm:$0xff] 0.0
          %356 = vst [vmem:[#allocation3 + $0x10] sm:$0xff] 0.0
          %357 = vst [vmem:[#allocation3 + $0x18] sm:$0xff] 0.0
          %358 = vst [vmem:[#allocation3 + $0x20] sm:$0xff] 0.0
          %359 = vst [vmem:[#allocation3 + $0x28] sm:$0xff] 0.0
          %360 = vst [vmem:[#allocation3 + $0x30] sm:$0xff] 0.0
          %361 = vst [vmem:[#allocation3 + $0x38] sm:$0xff] 0.0
        $region60: #{tpu_custom_call.1} parent=39 // pred_fallthru
          _
        %v362 = vld [vmem:[%s1] sm:$0xf]
        %v363 = vld [vmem:[%s1 + $0x4] sm:$0xf]
        %v364 = vld [vmem:[%s1 + $0x8] sm:$0xf]
        %v365 = vld [vmem:[%s1 + $0xc] sm:$0xf]
        %v366 = vld [vmem:[%s1 + $0x10] sm:$0xf]
        %v367 = vld [vmem:[%s1 + $0x14] sm:$0xf]
        %v368 = vld [vmem:[%s1 + $0x18] sm:$0xf]
        %v369 = vld [vmem:[%s1 + $0x1c] sm:$0xf]
        %v370 = vld [vmem:[%s270] sm:$0xff]
        %v371 = vld [vmem:[%s270 + $0x8] sm:$0xff]
        %v372 = vld [vmem:[%s270 + $0x10] sm:$0xff]
        %v373 = vld [vmem:[%s270 + $0x18] sm:$0xff]
        %v374 = vld [vmem:[%s270 + $0x20] sm:$0xff]
        %v375 = vld [vmem:[%s270 + $0x28] sm:$0xff]
        %v376 = vld [vmem:[%s270 + $0x30] sm:$0xff]
        %v377 = vld [vmem:[%s270 + $0x38] sm:$0xff]
        %v378 = vld [vmem:[%s270 + $0x40] sm:$0xff]
        %v379 = vld [vmem:[%s270 + $0x48] sm:$0xff]
        %v380 = vld [vmem:[%s270 + $0x50] sm:$0xff]
        %v381 = vld [vmem:[%s270 + $0x58] sm:$0xff]
        %v382 = vld [vmem:[#allocation7] sm:$0xff]
        %v383 = vld [vmem:[#allocation7 + $0x8] sm:$0xff]
        %v384 = vld [vmem:[#allocation7 + $0x10] sm:$0xff]
        %v385 = vld [vmem:[#allocation7 + $0x18] sm:$0xff]
        %v386 = vld [vmem:[#allocation7 + $0x20] sm:$0xff]
        %v387 = vld [vmem:[#allocation7 + $0x28] sm:$0xff]
        %v388 = vld [vmem:[#allocation7 + $0x30] sm:$0xff]
        %v389 = vld [vmem:[#allocation7 + $0x38] sm:$0xff]
        %v390 = vld [vmem:[#allocation2] sm:$0xff]
        %v391 = vld [vmem:[#allocation2 + $0x8] sm:$0xff]
        %v392 = vld [vmem:[#allocation2 + $0x10] sm:$0xff]
        %v393 = vld [vmem:[#allocation2 + $0x18] sm:$0xff]
        %v394 = vld [vmem:[#allocation2 + $0x20] sm:$0xff]
        %v395 = vld [vmem:[#allocation2 + $0x28] sm:$0xff]
        %v396 = vld [vmem:[#allocation2 + $0x30] sm:$0xff]
        %v397 = vld [vmem:[#allocation2 + $0x38] sm:$0xff]
        %v398 = vld [vmem:[#allocation2 + $0x40] sm:$0xff]
        %v399 = vld [vmem:[#allocation2 + $0x48] sm:$0xff]
        %v400 = vld [vmem:[#allocation2 + $0x50] sm:$0xff]
        %v401 = vld [vmem:[#allocation2 + $0x58] sm:$0xff]
        %v402 = vld [vmem:[#allocation2 + $0x60] sm:$0xff]
        %v403 = vld [vmem:[#allocation2 + $0x68] sm:$0xff]
        %v404 = vld [vmem:[#allocation2 + $0x70] sm:$0xff]
        %v405 = vld [vmem:[#allocation2 + $0x78] sm:$0xff]
        %v406 = vld [vmem:[#allocation2 + $0x80] sm:$0xff]
        %v407 = vld [vmem:[#allocation2 + $0x88] sm:$0xff]
        %v408 = vld [vmem:[#allocation2 + $0x90] sm:$0xff]
        %v409 = vld [vmem:[#allocation2 + $0x98] sm:$0xff]
        %v410 = vld [vmem:[#allocation2 + $0xa0] sm:$0xff]
        %v411 = vld [vmem:[#allocation2 + $0xa8] sm:$0xff]
        %v412 = vld [vmem:[#allocation2 + $0xb0] sm:$0xff]
        %v413 = vld [vmem:[#allocation2 + $0xb8] sm:$0xff]
        %v414 = vld [vmem:[#allocation2 + $0xc0] sm:$0xff]
        %v415 = vld [vmem:[#allocation2 + $0xc8] sm:$0xff]
        %v416 = vld [vmem:[#allocation2 + $0xd0] sm:$0xff]
        %v417 = vld [vmem:[#allocation2 + $0xd8] sm:$0xff]
        %v418 = vld [vmem:[#allocation2 + $0xe0] sm:$0xff]
        %v419 = vld [vmem:[#allocation2 + $0xe8] sm:$0xff]
        %v420 = vld [vmem:[#allocation2 + $0xf0] sm:$0xff]
        %v421 = vld [vmem:[#allocation2 + $0xf8] sm:$0xff]
        %v422 = vld [vmem:[#allocation2 + $0x100] sm:$0xff]
        %v423 = vld [vmem:[#allocation2 + $0x108] sm:$0xff]
        %v424 = vld [vmem:[#allocation2 + $0x110] sm:$0xff]
        %v425 = vld [vmem:[#allocation2 + $0x118] sm:$0xff]
        %v434 = vunpack.c.l.b16 %v382
        %v435 = vunpack.c.h.b16 %v382
        %v436 = vunpack.c.l.b16 %v383
        %v437 = vunpack.c.h.b16 %v383
        %v438 = vunpack.c.l.b16 %v384
        %v439 = vunpack.c.h.b16 %v384
        %v440 = vunpack.c.l.b16 %v385
        %v441 = vunpack.c.h.b16 %v385
        %v442 = vunpack.c.l.b16 %v386
        %v443 = vunpack.c.h.b16 %v386
        %v444 = vunpack.c.l.b16 %v387
        %v445 = vunpack.c.h.b16 %v387
        %v446 = vunpack.c.l.b16 %v388
        %v447 = vunpack.c.h.b16 %v388
        %v448 = vunpack.c.l.b16 %v389
        %v449 = vunpack.c.h.b16 %v389
        %v450 = vpack.c.b16 %v436, %v434
        %v451 = vpack.c.b16 %v437, %v435
        %v452 = vpack.c.b16 %v440, %v438
        %v453 = vpack.c.b16 %v441, %v439
        %v454 = vpack.c.b16 %v444, %v442
        %v455 = vpack.c.b16 %v445, %v443
        %v456 = vpack.c.b16 %v448, %v446
        %v457 = vpack.c.b16 %v449, %v447
        %v498 = vunpack.c.l.b16 %v390
        %v499 = vunpack.c.h.b16 %v390
        %v500 = vunpack.c.l.b16 %v391
        %v501 = vunpack.c.h.b16 %v391
        %v502 = vunpack.c.l.b16 %v392
        %v503 = vunpack.c.h.b16 %v392
        %v504 = vunpack.c.l.b16 %v393
        %v505 = vunpack.c.h.b16 %v393
        %v506 = vunpack.c.l.b16 %v394
        %v507 = vunpack.c.h.b16 %v394
        %v508 = vunpack.c.l.b16 %v395
        %v509 = vunpack.c.h.b16 %v395
        %v510 = vunpack.c.l.b16 %v396
        %v511 = vunpack.c.h.b16 %v396
        %v512 = vunpack.c.l.b16 %v397
        %v513 = vunpack.c.h.b16 %v397
        %v514 = vunpack.c.l.b16 %v398
        %v515 = vunpack.c.h.b16 %v398
        %v516 = vunpack.c.l.b16 %v399
        %v517 = vunpack.c.h.b16 %v399
        %v518 = vunpack.c.l.b16 %v400
        %v519 = vunpack.c.h.b16 %v400
        %v520 = vunpack.c.l.b16 %v401
        %v521 = vunpack.c.h.b16 %v401
        %v522 = vunpack.c.l.b16 %v402
        %v523 = vunpack.c.h.b16 %v402
        %v524 = vunpack.c.l.b16 %v403
        %v525 = vunpack.c.h.b16 %v403
        %v526 = vunpack.c.l.b16 %v404
        %v527 = vunpack.c.h.b16 %v404
        %v528 = vunpack.c.l.b16 %v405
        %v529 = vunpack.c.h.b16 %v405
        %v530 = vunpack.c.l.b16 %v406
        %v531 = vunpack.c.h.b16 %v406
        %v532 = vunpack.c.l.b16 %v407
        %v533 = vunpack.c.h.b16 %v407
        %v534 = vunpack.c.l.b16 %v408
        %v535 = vunpack.c.h.b16 %v408
        %v536 = vunpack.c.l.b16 %v409
        %v537 = vunpack.c.h.b16 %v409
        %v538 = vunpack.c.l.b16 %v410
        %v539 = vunpack.c.h.b16 %v410
        %v540 = vunpack.c.l.b16 %v411
        %v541 = vunpack.c.h.b16 %v411
        %v542 = vunpack.c.l.b16 %v412
        %v543 = vunpack.c.h.b16 %v412
        %v544 = vunpack.c.l.b16 %v413
        %v545 = vunpack.c.h.b16 %v413
        %v546 = vunpack.c.l.b16 %v414
        %v547 = vunpack.c.h.b16 %v414
        %v548 = vunpack.c.l.b16 %v415
        %v549 = vunpack.c.h.b16 %v415
        %v550 = vunpack.c.l.b16 %v416
        %v551 = vunpack.c.h.b16 %v416
        %v552 = vunpack.c.l.b16 %v417
        %v553 = vunpack.c.h.b16 %v417
        %v554 = vunpack.c.l.b16 %v418
        %v555 = vunpack.c.h.b16 %v418
        %v556 = vunpack.c.l.b16 %v419
        %v557 = vunpack.c.h.b16 %v419
        %v558 = vunpack.c.l.b16 %v420
        %v559 = vunpack.c.h.b16 %v420
        %v560 = vunpack.c.l.b16 %v421
        %v561 = vunpack.c.h.b16 %v421
        %v562 = vunpack.c.l.b16 %v422
        %v563 = vunpack.c.h.b16 %v422
        %v564 = vunpack.c.l.b16 %v423
        %v565 = vunpack.c.h.b16 %v423
        %v566 = vunpack.c.l.b16 %v424
        %v567 = vunpack.c.h.b16 %v424
        %v568 = vunpack.c.l.b16 %v425
        %v569 = vunpack.c.h.b16 %v425
        %v570 = vpack.c.b16 %v502, %v498
        %v571 = vpack.c.b16 %v503, %v499
        %v572 = vpack.c.b16 %v504, %v500
        %v573 = vpack.c.b16 %v505, %v501
        %v574 = vpack.c.b16 %v510, %v506
        %v575 = vpack.c.b16 %v511, %v507
        %v576 = vpack.c.b16 %v512, %v508
        %v577 = vpack.c.b16 %v513, %v509
        %v578 = vpack.c.b16 %v518, %v514
        %v579 = vpack.c.b16 %v519, %v515
        %v580 = vpack.c.b16 %v520, %v516
        %v581 = vpack.c.b16 %v521, %v517
        %v582 = vpack.c.b16 %v526, %v522
        %v583 = vpack.c.b16 %v527, %v523
        %v584 = vpack.c.b16 %v528, %v524
        %v585 = vpack.c.b16 %v529, %v525
        %v586 = vpack.c.b16 %v534, %v530
        %v587 = vpack.c.b16 %v535, %v531
        %v588 = vpack.c.b16 %v536, %v532
        %v589 = vpack.c.b16 %v537, %v533
        %v590 = vpack.c.b16 %v542, %v538
        %v591 = vpack.c.b16 %v543, %v539
        %v592 = vpack.c.b16 %v544, %v540
        %v593 = vpack.c.b16 %v545, %v541
        %v594 = vpack.c.b16 %v550, %v546
        %v595 = vpack.c.b16 %v551, %v547
        %v596 = vpack.c.b16 %v552, %v548
        %v597 = vpack.c.b16 %v553, %v549
        %v598 = vpack.c.b16 %v558, %v554
        %v599 = vpack.c.b16 %v559, %v555
        %v600 = vpack.c.b16 %v560, %v556
        %v601 = vpack.c.b16 %v561, %v557
        %v602 = vpack.c.b16 %v566, %v562
        %v603 = vpack.c.b16 %v567, %v563
        %v604 = vpack.c.b16 %v568, %v564
        %v605 = vpack.c.b16 %v569, %v565
        %vm642 = vcmask 130048
        %v644 = vsel %vm642, %v451, 0
        %v647 = vsel %vm642, %v453, 0
        %v650 = vsel %vm642, %v455, 0
        %v653 = vsel %vm642, %v457, 0
        %655 = vmatpush.bf16.msra.mxu0 %v598
        %656 = vmatpush.bf16.msra.mxu0 %v594
        %657 = vmatpush.bf16.msra.mxu0 %v590
        %658 = vmatpush.bf16.msra.mxu0 %v586
        %659 = vmatpush.bf16.msra.mxu0 %v582
        %660 = vmatpush.bf16.msra.mxu0 %v578
        %661 = vmatpush.bf16.msra.mxu0 %v574
        %662 = vmatpush.bf16.msra.mxu0 %v570
        %663 = vmatmul.bf16.gmra.mxu0 %v450
        %v664 = vpop.f32.mrf.mxu0
        %v665 = vadd.f32 0.0, %v664
        %v666 = vpop.f32.mrf.mxu0
        %v667 = vadd.f32 0.0, %v666
        %668 = vmatmul.bf16.gmra.mxu0 %v452
        %v669 = vpop.f32.mrf.mxu0
        %v670 = vadd.f32 0.0, %v669
        %v671 = vpop.f32.mrf.mxu0
        %v672 = vadd.f32 0.0, %v671
        %673 = vmatmul.bf16.gmra.mxu0 %v454
        %v674 = vpop.f32.mrf.mxu0
        %v675 = vadd.f32 0.0, %v674
        %v676 = vpop.f32.mrf.mxu0
        %v677 = vadd.f32 0.0, %v676
        %678 = vmatmul.bf16.gmra.mxu0 %v456
        %v679 = vpop.f32.mrf.mxu0
        %v680 = vadd.f32 0.0, %v679
        %v681 = vpop.f32.mrf.mxu0
        %v682 = vadd.f32 0.0, %v681
        %683 = vdwg.mxu0
        %684 = vmatpush.bf16.msra.mxu0 0
        %685 = vmatpush.bf16.msra.mxu0 0
        %686 = vmatpush.bf16.msra.mxu0 0
        %687 = vmatpush.bf16.msra.mxu0 0
        %688 = vmatpush.bf16.msra.mxu0 0
        %689 = vmatpush.bf16.msra.mxu0 0
        %690 = vmatpush.bf16.msra.mxu0 0
        %691 = vmatpush.bf16.msra.mxu0 %v602
        %692 = vmatmul.bf16.gmra.mxu0 %v644
        %v693 = vpop.f32.mrf.mxu0
        %v694 = vadd.f32 %v665, %v693
        %v695 = vpop.f32.mrf.mxu0
        %v696 = vadd.f32 %v667, %v695
        %697 = vmatmul.bf16.gmra.mxu0 %v647
        %v698 = vpop.f32.mrf.mxu0
        %v699 = vadd.f32 %v670, %v698
        %v700 = vpop.f32.mrf.mxu0
        %v701 = vadd.f32 %v672, %v700
        %702 = vmatmul.bf16.gmra.mxu0 %v650
        %v703 = vpop.f32.mrf.mxu0
        %v704 = vadd.f32 %v675, %v703
        %v705 = vpop.f32.mrf.mxu0
        %v706 = vadd.f32 %v677, %v705
        %707 = vmatmul.bf16.gmra.mxu0 %v653
        %v708 = vpop.f32.mrf.mxu0
        %v709 = vadd.f32 %v680, %v708
        %v710 = vpop.f32.mrf.mxu0
        %v711 = vadd.f32 %v682, %v710
        %712 = vdwg.mxu0
        %713 = vmatpush.bf16.msra.mxu0 %v599
        %714 = vmatpush.bf16.msra.mxu0 %v595
        %715 = vmatpush.bf16.msra.mxu0 %v591
        %716 = vmatpush.bf16.msra.mxu0 %v587
        %717 = vmatpush.bf16.msra.mxu0 %v583
        %718 = vmatpush.bf16.msra.mxu0 %v579
        %719 = vmatpush.bf16.msra.mxu0 %v575
        %720 = vmatpush.bf16.msra.mxu0 %v571
        %721 = vmatmul.bf16.gmra.mxu0 %v450
        %v722 = vpop.f32.mrf.mxu0
        %v723 = vadd.f32 0.0, %v722
        %v724 = vpop.f32.mrf.mxu0
        %v725 = vadd.f32 0.0, %v724
        %726 = vmatmul.bf16.gmra.mxu0 %v452
        %v727 = vpop.f32.mrf.mxu0
        %v728 = vadd.f32 0.0, %v727
        %v729 = vpop.f32.mrf.mxu0
        %v730 = vadd.f32 0.0, %v729
        %731 = vmatmul.bf16.gmra.mxu0 %v454
        %v732 = vpop.f32.mrf.mxu0
        %v733 = vadd.f32 0.0, %v732
        %v734 = vpop.f32.mrf.mxu0
        %v735 = vadd.f32 0.0, %v734
        %736 = vmatmul.bf16.gmra.mxu0 %v456
        %v737 = vpop.f32.mrf.mxu0
        %v738 = vadd.f32 0.0, %v737
        %v739 = vpop.f32.mrf.mxu0
        %v740 = vadd.f32 0.0, %v739
        %741 = vdwg.mxu0
        %742 = vmatpush.bf16.msra.mxu0 0
        %743 = vmatpush.bf16.msra.mxu0 0
        %744 = vmatpush.bf16.msra.mxu0 0
        %745 = vmatpush.bf16.msra.mxu0 0
        %746 = vmatpush.bf16.msra.mxu0 0
        %747 = vmatpush.bf16.msra.mxu0 0
        %748 = vmatpush.bf16.msra.mxu0 0
        %749 = vmatpush.bf16.msra.mxu0 %v603
        %750 = vmatmul.bf16.gmra.mxu0 %v644
        %v751 = vpop.f32.mrf.mxu0
        %v752 = vadd.f32 %v723, %v751
        %v753 = vpop.f32.mrf.mxu0
        %v754 = vadd.f32 %v725, %v753
        %755 = vmatmul.bf16.gmra.mxu0 %v647
        %v756 = vpop.f32.mrf.mxu0
        %v757 = vadd.f32 %v728, %v756
        %v758 = vpop.f32.mrf.mxu0
        %v759 = vadd.f32 %v730, %v758
        %760 = vmatmul.bf16.gmra.mxu0 %v650
        %v761 = vpop.f32.mrf.mxu0
        %v762 = vadd.f32 %v733, %v761
        %v763 = vpop.f32.mrf.mxu0
        %v764 = vadd.f32 %v735, %v763
        %765 = vmatmul.bf16.gmra.mxu0 %v653
        %v766 = vpop.f32.mrf.mxu0
        %v767 = vadd.f32 %v738, %v766
        %v768 = vpop.f32.mrf.mxu0
        %v769 = vadd.f32 %v740, %v768
        %770 = vdwg.mxu0
        %771 = vmatpush.bf16.msra.mxu0 %v600
        %772 = vmatpush.bf16.msra.mxu0 %v596
        %773 = vmatpush.bf16.msra.mxu0 %v592
        %774 = vmatpush.bf16.msra.mxu0 %v588
        %775 = vmatpush.bf16.msra.mxu0 %v584
        %776 = vmatpush.bf16.msra.mxu0 %v580
        %777 = vmatpush.bf16.msra.mxu0 %v576
        %778 = vmatpush.bf16.msra.mxu0 %v572
        %779 = vmatmul.bf16.gmra.mxu0 %v450
        %v780 = vpop.f32.mrf.mxu0
        %v781 = vadd.f32 0.0, %v780
        %v782 = vpop.f32.mrf.mxu0
        %v783 = vadd.f32 0.0, %v782
        %784 = vmatmul.bf16.gmra.mxu0 %v452
        %v785 = vpop.f32.mrf.mxu0
        %v786 = vadd.f32 0.0, %v785
        %v787 = vpop.f32.mrf.mxu0
        %v788 = vadd.f32 0.0, %v787
        %789 = vmatmul.bf16.gmra.mxu0 %v454
        %v790 = vpop.f32.mrf.mxu0
        %v791 = vadd.f32 0.0, %v790
        %v792 = vpop.f32.mrf.mxu0
        %v793 = vadd.f32 0.0, %v792
        %794 = vmatmul.bf16.gmra.mxu0 %v456
        %v795 = vpop.f32.mrf.mxu0
        %v796 = vadd.f32 0.0, %v795
        %v797 = vpop.f32.mrf.mxu0
        %v798 = vadd.f32 0.0, %v797
        %799 = vdwg.mxu0
        %800 = vmatpush.bf16.msra.mxu0 0
        %801 = vmatpush.bf16.msra.mxu0 0
        %802 = vmatpush.bf16.msra.mxu0 0
        %803 = vmatpush.bf16.msra.mxu0 0
        %804 = vmatpush.bf16.msra.mxu0 0
        %805 = vmatpush.bf16.msra.mxu0 0
        %806 = vmatpush.bf16.msra.mxu0 0
        %807 = vmatpush.bf16.msra.mxu0 %v604
        %808 = vmatmul.bf16.gmra.mxu0 %v644
        %v809 = vpop.f32.mrf.mxu0
        %v810 = vadd.f32 %v781, %v809
        %v811 = vpop.f32.mrf.mxu0
        %v812 = vadd.f32 %v783, %v811
        %813 = vmatmul.bf16.gmra.mxu0 %v647
        %v814 = vpop.f32.mrf.mxu0
        %v815 = vadd.f32 %v786, %v814
        %v816 = vpop.f32.mrf.mxu0
        %v817 = vadd.f32 %v788, %v816
        %818 = vmatmul.bf16.gmra.mxu0 %v650
        %v819 = vpop.f32.mrf.mxu0
        %v820 = vadd.f32 %v791, %v819
        %v821 = vpop.f32.mrf.mxu0
        %v822 = vadd.f32 %v793, %v821
        %823 = vmatmul.bf16.gmra.mxu0 %v653
        %v824 = vpop.f32.mrf.mxu0
        %v825 = vadd.f32 %v796, %v824
        %v826 = vpop.f32.mrf.mxu0
        %v827 = vadd.f32 %v798, %v826
        %828 = vdwg.mxu0
        %829 = vmatpush.bf16.msra.mxu0 %v601
        %830 = vmatpush.bf16.msra.mxu0 %v597
        %831 = vmatpush.bf16.msra.mxu0 %v593
        %832 = vmatpush.bf16.msra.mxu0 %v589
        %833 = vmatpush.bf16.msra.mxu0 %v585
        %834 = vmatpush.bf16.msra.mxu0 %v581
        %835 = vmatpush.bf16.msra.mxu0 %v577
        %836 = vmatpush.bf16.msra.mxu0 %v573
        %837 = vmatmul.bf16.gmra.mxu0 %v450
        %v838 = vpop.f32.mrf.mxu0
        %v839 = vadd.f32 0.0, %v838
        %v840 = vpop.f32.mrf.mxu0
        %v841 = vadd.f32 0.0, %v840
        %842 = vmatmul.bf16.gmra.mxu0 %v452
        %v843 = vpop.f32.mrf.mxu0
        %v844 = vadd.f32 0.0, %v843
        %v845 = vpop.f32.mrf.mxu0
        %v846 = vadd.f32 0.0, %v845
        %847 = vmatmul.bf16.gmra.mxu0 %v454
        %v848 = vpop.f32.mrf.mxu0
        %v849 = vadd.f32 0.0, %v848
        %v850 = vpop.f32.mrf.mxu0
        %v851 = vadd.f32 0.0, %v850
        %852 = vmatmul.bf16.gmra.mxu0 %v456
        %v853 = vpop.f32.mrf.mxu0
        %v854 = vadd.f32 0.0, %v853
        %v855 = vpop.f32.mrf.mxu0
        %v856 = vadd.f32 0.0, %v855
        %857 = vdwg.mxu0
        %858 = vmatpush.bf16.msra.mxu0 0
        %859 = vmatpush.bf16.msra.mxu0 0
        %860 = vmatpush.bf16.msra.mxu0 0
        %861 = vmatpush.bf16.msra.mxu0 0
        %862 = vmatpush.bf16.msra.mxu0 0
        %863 = vmatpush.bf16.msra.mxu0 0
        %864 = vmatpush.bf16.msra.mxu0 0
        %865 = vmatpush.bf16.msra.mxu0 %v605
        %866 = vmatmul.bf16.gmra.mxu0 %v644
        %v867 = vpop.f32.mrf.mxu0
        %v868 = vadd.f32 %v839, %v867
        %v869 = vpop.f32.mrf.mxu0
        %v870 = vadd.f32 %v841, %v869
        %871 = vmatmul.bf16.gmra.mxu0 %v647
        %v872 = vpop.f32.mrf.mxu0
        %v873 = vadd.f32 %v844, %v872
        %v874 = vpop.f32.mrf.mxu0
        %v875 = vadd.f32 %v846, %v874
        %876 = vmatmul.bf16.gmra.mxu0 %v650
        %v877 = vpop.f32.mrf.mxu0
        %v878 = vadd.f32 %v849, %v877
        %v879 = vpop.f32.mrf.mxu0
        %v880 = vadd.f32 %v851, %v879
        %881 = vmatmul.bf16.gmra.mxu0 %v653
        %v882 = vpop.f32.mrf.mxu0
        %v883 = vadd.f32 %v854, %v882
        %v884 = vpop.f32.mrf.mxu0
        %v885 = vadd.f32 %v856, %v884
        %886 = vdwg.mxu0
        %v895 = vunpack.c.l.b16 %v362
        %v896 = vunpack.c.l.b16 %v363
        %v897 = vunpack.c.l.b16 %v364
        %v898 = vunpack.c.l.b16 %v365
        %v899 = vunpack.c.l.b16 %v366
        %v900 = vunpack.c.l.b16 %v367
        %v901 = vunpack.c.l.b16 %v368
        %v902 = vunpack.c.l.b16 %v369
        %v903 = vpack.c.b16 %v896, %v895
        %v904 = vpack.c.b16 %v898, %v897
        %v905 = vpack.c.b16 %v900, %v899
        %v906 = vpack.c.b16 %v902, %v901
        %v919 = vunpack.c.l.b16 %v370
        %v920 = vunpack.c.h.b16 %v370
        %v921 = vunpack.c.l.b16 %v371
        %v922 = vunpack.c.h.b16 %v371
        %v923 = vunpack.c.l.b16 %v372
        %v924 = vunpack.c.h.b16 %v372
        %v925 = vunpack.c.l.b16 %v373
        %v926 = vunpack.c.h.b16 %v373
        %v927 = vunpack.c.l.b16 %v374
        %v928 = vunpack.c.h.b16 %v374
        %v929 = vunpack.c.l.b16 %v375
        %v930 = vunpack.c.h.b16 %v375
        %v931 = vunpack.c.l.b16 %v376
        %v932 = vunpack.c.h.b16 %v376
        %v933 = vunpack.c.l.b16 %v377
        %v934 = vunpack.c.h.b16 %v377
        %v935 = vunpack.c.l.b16 %v378
        %v936 = vunpack.c.h.b16 %v378
        %v937 = vunpack.c.l.b16 %v379
        %v938 = vunpack.c.h.b16 %v379
        %v939 = vunpack.c.l.b16 %v380
        %v940 = vunpack.c.h.b16 %v380
        %v941 = vunpack.c.l.b16 %v381
        %v942 = vunpack.c.h.b16 %v381
        %v943 = vpack.c.b16 %v923, %v919
        %v944 = vpack.c.b16 %v924, %v920
        %v945 = vpack.c.b16 %v925, %v921
        %v946 = vpack.c.b16 %v926, %v922
        %v947 = vpack.c.b16 %v931, %v927
        %v948 = vpack.c.b16 %v932, %v928
        %v949 = vpack.c.b16 %v933, %v929
        %v950 = vpack.c.b16 %v934, %v930
        %v951 = vpack.c.b16 %v939, %v935
        %v952 = vpack.c.b16 %v940, %v936
        %v953 = vpack.c.b16 %v941, %v937
        %v954 = vpack.c.b16 %v942, %v938
        %vm967 = vcmask 392192
        %v969 = vsel %vm967, %v903, 0
        %v972 = vsel %vm967, %v904, 0
        %v975 = vsel %vm967, %v905, 0
        %v978 = vsel %vm967, %v906, 0
        %980 = vmatpush.bf16.msra.mxu0 0
        %981 = vmatpush.bf16.msra.mxu0 0
        %982 = vmatpush.bf16.msra.mxu0 0
        %983 = vmatpush.bf16.msra.mxu0 0
        %984 = vmatpush.bf16.msra.mxu0 0
        %985 = vmatpush.bf16.msra.mxu0 %v951
        %986 = vmatpush.bf16.msra.mxu0 %v947
        %987 = vmatpush.bf16.msra.mxu0 %v943
        %988 = vmatmul.bf16.gmra.mxu0 %v969
        %v989 = vpop.f32.mrf.mxu0
        %v990 = vadd.f32 %v694, %v989
        %v991 = vpop.f32.mrf.mxu0
        %v992 = vadd.f32 %v696, %v991
        %993 = vmatmul.bf16.gmra.mxu0 %v972
        %v994 = vpop.f32.mrf.mxu0
        %v995 = vadd.f32 %v699, %v994
        %v996 = vpop.f32.mrf.mxu0
        %v997 = vadd.f32 %v701, %v996
        %998 = vmatmul.bf16.gmra.mxu0 %v975
        %v999 = vpop.f32.mrf.mxu0
        %v1000 = vadd.f32 %v704, %v999
        %v1001 = vpop.f32.mrf.mxu0
        %v1002 = vadd.f32 %v706, %v1001
        %1003 = vmatmul.bf16.gmra.mxu0 %v978
        %v1004 = vpop.f32.mrf.mxu0
        %v1005 = vadd.f32 %v709, %v1004
        %v1006 = vpop.f32.mrf.mxu0
        %v1007 = vadd.f32 %v711, %v1006
        %1008 = vdwg.mxu0
        %1009 = vmatpush.bf16.msra.mxu0 0
        %1010 = vmatpush.bf16.msra.mxu0 0
        %1011 = vmatpush.bf16.msra.mxu0 0
        %1012 = vmatpush.bf16.msra.mxu0 0
        %1013 = vmatpush.bf16.msra.mxu0 0
        %1014 = vmatpush.bf16.msra.mxu0 %v952
        %1015 = vmatpush.bf16.msra.mxu0 %v948
        %1016 = vmatpush.bf16.msra.mxu0 %v944
        %1017 = vmatmul.bf16.gmra.mxu0 %v969
        %v1018 = vpop.f32.mrf.mxu0
        %v1019 = vadd.f32 %v752, %v1018
        %v1020 = vpop.f32.mrf.mxu0
        %v1021 = vadd.f32 %v754, %v1020
        %1022 = vmatmul.bf16.gmra.mxu0 %v972
        %v1023 = vpop.f32.mrf.mxu0
        %v1024 = vadd.f32 %v757, %v1023
        %v1025 = vpop.f32.mrf.mxu0
        %v1026 = vadd.f32 %v759, %v1025
        %1027 = vmatmul.bf16.gmra.mxu0 %v975
        %v1028 = vpop.f32.mrf.mxu0
        %v1029 = vadd.f32 %v762, %v1028
        %v1030 = vpop.f32.mrf.mxu0
        %v1031 = vadd.f32 %v764, %v1030
        %1032 = vmatmul.bf16.gmra.mxu0 %v978
        %v1033 = vpop.f32.mrf.mxu0
        %v1034 = vadd.f32 %v767, %v1033
        %v1035 = vpop.f32.mrf.mxu0
        %v1036 = vadd.f32 %v769, %v1035
        %1037 = vdwg.mxu0
        %1038 = vmatpush.bf16.msra.mxu0 0
        %1039 = vmatpush.bf16.msra.mxu0 0
        %1040 = vmatpush.bf16.msra.mxu0 0
        %1041 = vmatpush.bf16.msra.mxu0 0
        %1042 = vmatpush.bf16.msra.mxu0 0
        %1043 = vmatpush.bf16.msra.mxu0 %v953
        %1044 = vmatpush.bf16.msra.mxu0 %v949
        %1045 = vmatpush.bf16.msra.mxu0 %v945
        %1046 = vmatmul.bf16.gmra.mxu0 %v969
        %v1047 = vpop.f32.mrf.mxu0
        %v1048 = vadd.f32 %v810, %v1047
        %v1049 = vpop.f32.mrf.mxu0
        %v1050 = vadd.f32 %v812, %v1049
        %1051 = vmatmul.bf16.gmra.mxu0 %v972
        %v1052 = vpop.f32.mrf.mxu0
        %v1053 = vadd.f32 %v815, %v1052
        %v1054 = vpop.f32.mrf.mxu0
        %v1055 = vadd.f32 %v817, %v1054
        %1056 = vmatmul.bf16.gmra.mxu0 %v975
        %v1057 = vpop.f32.mrf.mxu0
        %v1058 = vadd.f32 %v820, %v1057
        %v1059 = vpop.f32.mrf.mxu0
        %v1060 = vadd.f32 %v822, %v1059
        %1061 = vmatmul.bf16.gmra.mxu0 %v978
        %v1062 = vpop.f32.mrf.mxu0
        %v1063 = vadd.f32 %v825, %v1062
        %v1064 = vpop.f32.mrf.mxu0
        %v1065 = vadd.f32 %v827, %v1064
        %1066 = vdwg.mxu0
        %1067 = vmatpush.bf16.msra.mxu0 0
        %1068 = vmatpush.bf16.msra.mxu0 0
        %1069 = vmatpush.bf16.msra.mxu0 0
        %1070 = vmatpush.bf16.msra.mxu0 0
        %1071 = vmatpush.bf16.msra.mxu0 0
        %1072 = vmatpush.bf16.msra.mxu0 %v954
        %1073 = vmatpush.bf16.msra.mxu0 %v950
        %1074 = vmatpush.bf16.msra.mxu0 %v946
        %1075 = vmatmul.bf16.gmra.mxu0 %v969
        %v1076 = vpop.f32.mrf.mxu0
        %v1077 = vadd.f32 %v868, %v1076
        %v1078 = vpop.f32.mrf.mxu0
        %v1079 = vadd.f32 %v870, %v1078
        %1080 = vmatmul.bf16.gmra.mxu0 %v972
        %v1081 = vpop.f32.mrf.mxu0
        %v1082 = vadd.f32 %v873, %v1081
        %v1083 = vpop.f32.mrf.mxu0
        %v1084 = vadd.f32 %v875, %v1083
        %1085 = vmatmul.bf16.gmra.mxu0 %v975
        %v1086 = vpop.f32.mrf.mxu0
        %v1087 = vadd.f32 %v878, %v1086
        %v1088 = vpop.f32.mrf.mxu0
        %v1089 = vadd.f32 %v880, %v1088
        %1090 = vmatmul.bf16.gmra.mxu0 %v978
        %v1091 = vpop.f32.mrf.mxu0
        %v1092 = vadd.f32 %v883, %v1091
        %v1093 = vpop.f32.mrf.mxu0
        %v1094 = vadd.f32 %v885, %v1093
        %1095 = vdwg.mxu0
        %v1096 = vld [vmem:[#allocation9] sm:$0xff]
        %v1097 = vld [vmem:[#allocation9 + $0x8] sm:$0xff]
        %v1098 = vld [vmem:[#allocation9 + $0x10] sm:$0xff]
        %v1099 = vld [vmem:[#allocation9 + $0x18] sm:$0xff]
        %v1100 = vld [vmem:[#allocation9 + $0x20] sm:$0xff]
        %v1101 = vld [vmem:[#allocation9 + $0x28] sm:$0xff]
        %v1102 = vld [vmem:[#allocation9 + $0x30] sm:$0xff]
        %v1103 = vld [vmem:[#allocation9 + $0x38] sm:$0xff]
        %v1104 = vld [vmem:[#allocation9 + $0x40] sm:$0xff]
        %v1105 = vld [vmem:[#allocation9 + $0x48] sm:$0xff]
        %v1106 = vld [vmem:[#allocation9 + $0x50] sm:$0xff]
        %v1107 = vld [vmem:[#allocation9 + $0x58] sm:$0xff]
        %v1108 = vld [vmem:[#allocation9 + $0x60] sm:$0xff]
        %v1109 = vld [vmem:[#allocation9 + $0x68] sm:$0xff]
        %v1110 = vld [vmem:[#allocation9 + $0x70] sm:$0xff]
        %v1111 = vld [vmem:[#allocation9 + $0x78] sm:$0xff]
        %v1112 = vld [vmem:[#allocation9 + $0x80] sm:$0xff]
        %v1113 = vld [vmem:[#allocation9 + $0x88] sm:$0xff]
        %v1114 = vld [vmem:[#allocation9 + $0x90] sm:$0xff]
        %v1115 = vld [vmem:[#allocation9 + $0x98] sm:$0xff]
        %v1116 = vld [vmem:[#allocation9 + $0xa0] sm:$0xff]
        %v1117 = vld [vmem:[#allocation9 + $0xa8] sm:$0xff]
        %v1118 = vld [vmem:[#allocation9 + $0xb0] sm:$0xff]
        %v1119 = vld [vmem:[#allocation9 + $0xb8] sm:$0xff]
        %v1120 = vld [vmem:[#allocation3] sm:$0xff]
        %v1121 = vld [vmem:[#allocation3 + $0x8] sm:$0xff]
        %v1122 = vld [vmem:[#allocation3 + $0x10] sm:$0xff]
        %v1123 = vld [vmem:[#allocation3 + $0x18] sm:$0xff]
        %v1124 = vld [vmem:[#allocation3 + $0x20] sm:$0xff]
        %v1125 = vld [vmem:[#allocation3 + $0x28] sm:$0xff]
        %v1126 = vld [vmem:[#allocation3 + $0x30] sm:$0xff]
        %v1127 = vld [vmem:[#allocation3 + $0x38] sm:$0xff]
        %v1128 = vmul.f32 %v1096, %v1120
        %v1129 = vmul.f32 %v1097, %v1121
        %v1130 = vmul.f32 %v1098, %v1122
        %v1131 = vmul.f32 %v1099, %v1123
        %v1132 = vmul.f32 %v1100, %v1124
        %v1133 = vmul.f32 %v1101, %v1125
        %v1134 = vmul.f32 %v1102, %v1126
        %v1135 = vmul.f32 %v1103, %v1127
        %v1136 = vadd.f32 %v990, %v1128
        %v1137 = vadd.f32 %v1019, %v1129
        %v1138 = vadd.f32 %v1048, %v1130
        %v1139 = vadd.f32 %v1077, %v1131
        %v1140 = vadd.f32 %v992, %v1132
        %v1141 = vadd.f32 %v1021, %v1133
        %v1142 = vadd.f32 %v1050, %v1134
        %v1143 = vadd.f32 %v1079, %v1135
        %v1144 = vmul.f32 %v1136, 0.5
        %v1145 = vmul.f32 %v1137, 0.5
        %v1146 = vmul.f32 %v1138, 0.5
        %v1147 = vmul.f32 %v1139, 0.5
        %v1148 = vmul.f32 %v1140, 0.5
        %v1149 = vmul.f32 %v1141, 0.5
        %v1150 = vmul.f32 %v1142, 0.5
        %v1151 = vmul.f32 %v1143, 0.5
        %v1152 = vtanh.pop %v1144
        %v1153 = vtanh.pop %v1145
        %v1154 = vtanh.pop %v1146
        %v1155 = vtanh.pop %v1147
        %v1156 = vtanh.pop %v1148
        %v1157 = vtanh.pop %v1149
        %v1158 = vtanh.pop %v1150
        %v1159 = vtanh.pop %v1151
        %v1160 = vmul.f32 %v1152, 0.5
        %v1161 = vmul.f32 %v1153, 0.5
        %v1162 = vmul.f32 %v1154, 0.5
        %v1163 = vmul.f32 %v1155, 0.5
        %v1164 = vmul.f32 %v1156, 0.5
        %v1165 = vmul.f32 %v1157, 0.5
        %v1166 = vmul.f32 %v1158, 0.5
        %v1167 = vmul.f32 %v1159, 0.5
        %v1168 = vadd.f32 %v1160, 0.5
        %v1169 = vadd.f32 %v1161, 0.5
        %v1170 = vadd.f32 %v1162, 0.5
        %v1171 = vadd.f32 %v1163, 0.5
        %v1172 = vadd.f32 %v1164, 0.5
        %v1173 = vadd.f32 %v1165, 0.5
        %v1174 = vadd.f32 %v1166, 0.5
        %v1175 = vadd.f32 %v1167, 0.5
        %v1176 = vmul.f32 %v1104, %v1120
        %v1177 = vmul.f32 %v1105, %v1121
        %v1178 = vmul.f32 %v1106, %v1122
        %v1179 = vmul.f32 %v1107, %v1123
        %v1180 = vmul.f32 %v1108, %v1124
        %v1181 = vmul.f32 %v1109, %v1125
        %v1182 = vmul.f32 %v1110, %v1126
        %v1183 = vmul.f32 %v1111, %v1127
        %v1184 = vadd.f32 %v995, %v1176
        %v1185 = vadd.f32 %v1024, %v1177
        %v1186 = vadd.f32 %v1053, %v1178
        %v1187 = vadd.f32 %v1082, %v1179
        %v1188 = vadd.f32 %v997, %v1180
        %v1189 = vadd.f32 %v1026, %v1181
        %v1190 = vadd.f32 %v1055, %v1182
        %v1191 = vadd.f32 %v1084, %v1183
        %v1192 = vmul.f32 %v1184, 0.5
        %v1193 = vmul.f32 %v1185, 0.5
        %v1194 = vmul.f32 %v1186, 0.5
        %v1195 = vmul.f32 %v1187, 0.5
        %v1196 = vmul.f32 %v1188, 0.5
        %v1197 = vmul.f32 %v1189, 0.5
        %v1198 = vmul.f32 %v1190, 0.5
        %v1199 = vmul.f32 %v1191, 0.5
        %v1200 = vtanh.pop %v1192
        %v1201 = vtanh.pop %v1193
        %v1202 = vtanh.pop %v1194
        %v1203 = vtanh.pop %v1195
        %v1204 = vtanh.pop %v1196
        %v1205 = vtanh.pop %v1197
        %v1206 = vtanh.pop %v1198
        %v1207 = vtanh.pop %v1199
        %v1208 = vmul.f32 %v1200, 0.5
        %v1209 = vmul.f32 %v1201, 0.5
        %v1210 = vmul.f32 %v1202, 0.5
        %v1211 = vmul.f32 %v1203, 0.5
        %v1212 = vmul.f32 %v1204, 0.5
        %v1213 = vmul.f32 %v1205, 0.5
        %v1214 = vmul.f32 %v1206, 0.5
        %v1215 = vmul.f32 %v1207, 0.5
        %v1216 = vadd.f32 %v1208, 0.5
        %v1217 = vadd.f32 %v1209, 0.5
        %v1218 = vadd.f32 %v1210, 0.5
        %v1219 = vadd.f32 %v1211, 0.5
        %v1220 = vadd.f32 %v1212, 0.5
        %v1221 = vadd.f32 %v1213, 0.5
        %v1222 = vadd.f32 %v1214, 0.5
        %v1223 = vadd.f32 %v1215, 0.5
        %v1224 = vmul.f32 %v1216, %v1120
        %v1225 = vmul.f32 %v1217, %v1121
        %v1226 = vmul.f32 %v1218, %v1122
        %v1227 = vmul.f32 %v1219, %v1123
        %v1228 = vmul.f32 %v1220, %v1124
        %v1229 = vmul.f32 %v1221, %v1125
        %v1230 = vmul.f32 %v1222, %v1126
        %v1231 = vmul.f32 %v1223, %v1127
        %v1232 = vtanh.pop %v1000
        %v1233 = vtanh.pop %v1029
        %v1234 = vtanh.pop %v1058
        %v1235 = vtanh.pop %v1087
        %v1236 = vtanh.pop %v1002
        %v1237 = vtanh.pop %v1031
        %v1238 = vtanh.pop %v1060
        %v1239 = vtanh.pop %v1089
        %v1240 = vmul.f32 %v1168, %v1232
        %v1241 = vmul.f32 %v1169, %v1233
        %v1242 = vmul.f32 %v1170, %v1234
        %v1243 = vmul.f32 %v1171, %v1235
        %v1244 = vmul.f32 %v1172, %v1236
        %v1245 = vmul.f32 %v1173, %v1237
        %v1246 = vmul.f32 %v1174, %v1238
        %v1247 = vmul.f32 %v1175, %v1239
        %v1248 = vadd.f32 %v1224, %v1240
        %v1249 = vadd.f32 %v1225, %v1241
        %v1250 = vadd.f32 %v1226, %v1242
        %v1251 = vadd.f32 %v1227, %v1243
        %v1252 = vadd.f32 %v1228, %v1244
        %v1253 = vadd.f32 %v1229, %v1245
        %v1254 = vadd.f32 %v1230, %v1246
        %v1255 = vadd.f32 %v1231, %v1247
        %v1256 = vmul.f32 %v1112, %v1248
        %v1257 = vmul.f32 %v1113, %v1249
        %v1258 = vmul.f32 %v1114, %v1250
        %v1259 = vmul.f32 %v1115, %v1251
        %v1260 = vmul.f32 %v1116, %v1252
        %v1261 = vmul.f32 %v1117, %v1253
        %v1262 = vmul.f32 %v1118, %v1254
        %v1263 = vmul.f32 %v1119, %v1255
        %v1264 = vadd.f32 %v1005, %v1256
        %v1265 = vadd.f32 %v1034, %v1257
        %v1266 = vadd.f32 %v1063, %v1258
        %v1267 = vadd.f32 %v1092, %v1259
        %v1268 = vadd.f32 %v1007, %v1260
        %v1269 = vadd.f32 %v1036, %v1261
        %v1270 = vadd.f32 %v1065, %v1262
        %v1271 = vadd.f32 %v1094, %v1263
        %v1272 = vmul.f32 %v1264, 0.5
        %v1273 = vmul.f32 %v1265, 0.5
        %v1274 = vmul.f32 %v1266, 0.5
        %v1275 = vmul.f32 %v1267, 0.5
        %v1276 = vmul.f32 %v1268, 0.5
        %v1277 = vmul.f32 %v1269, 0.5
        %v1278 = vmul.f32 %v1270, 0.5
        %v1279 = vmul.f32 %v1271, 0.5
        %v1280 = vtanh.pop %v1272
        %v1281 = vtanh.pop %v1273
        %v1282 = vtanh.pop %v1274
        %v1283 = vtanh.pop %v1275
        %v1284 = vtanh.pop %v1276
        %v1285 = vtanh.pop %v1277
        %v1286 = vtanh.pop %v1278
        %v1287 = vtanh.pop %v1279
        %v1288 = vmul.f32 %v1280, 0.5
        %v1289 = vmul.f32 %v1281, 0.5
        %v1290 = vmul.f32 %v1282, 0.5
        %v1291 = vmul.f32 %v1283, 0.5
        %v1292 = vmul.f32 %v1284, 0.5
        %v1293 = vmul.f32 %v1285, 0.5
        %v1294 = vmul.f32 %v1286, 0.5
        %v1295 = vmul.f32 %v1287, 0.5
        %v1296 = vadd.f32 %v1288, 0.5
        %v1297 = vadd.f32 %v1289, 0.5
        %v1298 = vadd.f32 %v1290, 0.5
        %v1299 = vadd.f32 %v1291, 0.5
        %v1300 = vadd.f32 %v1292, 0.5
        %v1301 = vadd.f32 %v1293, 0.5
        %v1302 = vadd.f32 %v1294, 0.5
        %v1303 = vadd.f32 %v1295, 0.5
        %v1304 = vtanh.pop %v1248
        %v1305 = vtanh.pop %v1249
        %v1306 = vtanh.pop %v1250
        %v1307 = vtanh.pop %v1251
        %v1308 = vtanh.pop %v1252
        %v1309 = vtanh.pop %v1253
        %v1310 = vtanh.pop %v1254
        %v1311 = vtanh.pop %v1255
        %v1312 = vmul.f32 %v1296, %v1304
        %v1313 = vmul.f32 %v1297, %v1305
        %v1314 = vmul.f32 %v1298, %v1306
        %v1315 = vmul.f32 %v1299, %v1307
        %v1316 = vmul.f32 %v1300, %v1308
        %v1317 = vmul.f32 %v1301, %v1309
        %v1318 = vmul.f32 %v1302, %v1310
        %v1319 = vmul.f32 %v1303, %v1311
        %1320 = vst [vmem:[#allocation3] sm:$0xff] %v1248
        %1321 = vst [vmem:[#allocation3 + $0x8] sm:$0xff] %v1249
        %1322 = vst [vmem:[#allocation3 + $0x10] sm:$0xff] %v1250
        %1323 = vst [vmem:[#allocation3 + $0x18] sm:$0xff] %v1251
        %1324 = vst [vmem:[#allocation3 + $0x20] sm:$0xff] %v1252
        %1325 = vst [vmem:[#allocation3 + $0x28] sm:$0xff] %v1253
        %1326 = vst [vmem:[#allocation3 + $0x30] sm:$0xff] %v1254
        %1327 = vst [vmem:[#allocation3 + $0x38] sm:$0xff] %v1255
        %1328 = vst [vmem:[%s312] sm:$0xff] %v1312
        %1329 = vst [vmem:[%s312 + $0x8] sm:$0xff] %v1313
        %1330 = vst [vmem:[%s312 + $0x10] sm:$0xff] %v1314
        %1331 = vst [vmem:[%s312 + $0x18] sm:$0xff] %v1315
        %1332 = vst [vmem:[%s312 + $0x20] sm:$0xff] %v1316
        %1333 = vst [vmem:[%s312 + $0x28] sm:$0xff] %v1317
        %1334 = vst [vmem:[%s312 + $0x30] sm:$0xff] %v1318
        %1335 = vst [vmem:[%s312 + $0x38] sm:$0xff] %v1319
        %s1336 = sadd.s32 %s29, 1
        %p1337 = scmp.lt.s32.totalorder %s1336, 4
        // Predicated region
        $region61: #{tpu_custom_call.1} parent=39 // pred_check
          %p1338 = pneg %p1337
        $region62: #{tpu_custom_call.1} parent=39 // pred_check_branch
          %1340 = sbr.rel (%p1338) target = $region64
        $region63: #{tpu_custom_call.1} parent=39 // pred_region
          %1341 = vrot.lane.b32.xlu0 %v1312, 17
          %v1342 = vpop.permute.xlu0 %1341
          %1343 = vrot.lane.b32.xlu0 %v1316, 17
          %v1344 = vpop.permute.xlu0 %1343
          %1345 = vrot.lane.b32.xlu0 %v1313, 17
          %v1346 = vpop.permute.xlu0 %1345
          %1347 = vrot.lane.b32.xlu0 %v1317, 17
          %v1348 = vpop.permute.xlu0 %1347
          %1349 = vrot.lane.b32.xlu0 %v1314, 17
          %v1350 = vpop.permute.xlu0 %1349
          %1351 = vrot.lane.b32.xlu0 %v1318, 17
          %v1352 = vpop.permute.xlu0 %1351
          %1353 = vrot.lane.b32.xlu0 %v1315, 17
          %v1354 = vpop.permute.xlu0 %1353
          %1355 = vrot.lane.b32.xlu0 %v1319, 17
          %v1356 = vpop.permute.xlu0 %1355
          %v1357 = vlaneseq
          %v1358 = vand.u32 %v1357, 127
          %vm1359 = vcmp.lt.s32.totalorder %v1358, 17
          %v1360 = vsel %vm1359, %v1350, %v1354
          %v1361 = vsel %vm1359, %v1352, %v1356
          %v1362 = vsel %vm1359, %v1346, %v1350
          %v1363 = vsel %vm1359, %v1348, %v1352
          %v1364 = vsel %vm1359, %v1342, %v1346
          %v1365 = vsel %vm1359, %v1344, %v1348
          %v1366 = vsel %vm1359, %v1354, %v1342
          %v1367 = vsel %vm1359, %v1356, %v1344
          %v1368 = vld [vmem:[#allocation10] sm:$0xff]
          %v1369 = vld [vmem:[#allocation10 + $0x8] sm:$0xff]
          %v1370 = vld [vmem:[#allocation10 + $0x10] sm:$0xff]
          %v1371 = vld [vmem:[#allocation10 + $0x18] sm:$0xff]
          %v1372 = vld [vmem:[#allocation10 + $0x20] sm:$0xff]
          %v1373 = vld [vmem:[#allocation10 + $0x28] sm:$0xff]
          %v1374 = vld [vmem:[#allocation10 + $0x30] sm:$0xff]
          %v1375 = vld [vmem:[#allocation10 + $0x38] sm:$0xff]
          %v1376 = vmul.f32 %v1366, %v1368
          %v1377 = vmul.f32 %v1364, %v1369
          %v1378 = vmul.f32 %v1362, %v1370
          %v1379 = vmul.f32 %v1360, %v1371
          %v1380 = vmul.f32 %v1367, %v1372
          %v1381 = vmul.f32 %v1365, %v1373
          %v1382 = vmul.f32 %v1363, %v1374
          %v1383 = vmul.f32 %v1361, %v1375
          %v1384 = vpack.c.bf16 %v1377, %v1376
          %v1385 = vpack.c.bf16 %v1379, %v1378
          %v1386 = vpack.c.bf16 %v1381, %v1380
          %v1387 = vpack.c.bf16 %v1383, %v1382
          %1388 = vst [vmem:[#allocation2] sm:$0xff] %v1384
          %1389 = vst [vmem:[#allocation2 + $0x8] sm:$0xff] %v1385
          %1390 = vst [vmem:[#allocation2 + $0x10] sm:$0xff] %v1386
          %1391 = vst [vmem:[#allocation2 + $0x18] sm:$0xff] %v1387
          %1392 = vrot.lane.b32.xlu0 %v1312, 16
          %v1393 = vpop.permute.xlu0 %1392
          %1394 = vrot.lane.b32.xlu0 %v1316, 16
          %v1395 = vpop.permute.xlu0 %1394
          %1396 = vrot.lane.b32.xlu0 %v1313, 16
          %v1397 = vpop.permute.xlu0 %1396
          %1398 = vrot.lane.b32.xlu0 %v1317, 16
          %v1399 = vpop.permute.xlu0 %1398
          %1400 = vrot.lane.b32.xlu0 %v1314, 16
          %v1401 = vpop.permute.xlu0 %1400
          %1402 = vrot.lane.b32.xlu0 %v1318, 16
          %v1403 = vpop.permute.xlu0 %1402
          %1404 = vrot.lane.b32.xlu0 %v1315, 16
          %v1405 = vpop.permute.xlu0 %1404
          %1406 = vrot.lane.b32.xlu0 %v1319, 16
          %v1407 = vpop.permute.xlu0 %1406
          %vm1408 = vcmp.lt.s32.totalorder %v1358, 16
          %v1409 = vsel %vm1408, %v1401, %v1405
          %v1410 = vsel %vm1408, %v1403, %v1407
          %v1411 = vsel %vm1408, %v1397, %v1401
          %v1412 = vsel %vm1408, %v1399, %v1403
          %v1413 = vsel %vm1408, %v1393, %v1397
          %v1414 = vsel %vm1408, %v1395, %v1399
          %v1415 = vsel %vm1408, %v1405, %v1393
          %v1416 = vsel %vm1408, %v1407, %v1395
          %s1417 = scalar_lea.vmem [#allocation10], 64
          %v1418 = vld [vmem:[%s1417] sm:$0xff]
          %v1419 = vld [vmem:[%s1417 + $0x8] sm:$0xff]
          %v1420 = vld [vmem:[%s1417 + $0x10] sm:$0xff]
          %v1421 = vld [vmem:[%s1417 + $0x18] sm:$0xff]
          %v1422 = vld [vmem:[%s1417 + $0x20] sm:$0xff]
          %v1423 = vld [vmem:[%s1417 + $0x28] sm:$0xff]
          %v1424 = vld [vmem:[%s1417 + $0x30] sm:$0xff]
          %v1425 = vld [vmem:[%s1417 + $0x38] sm:$0xff]
          %v1426 = vmul.f32 %v1415, %v1418
          %v1427 = vmul.f32 %v1413, %v1419
          %v1428 = vmul.f32 %v1411, %v1420
          %v1429 = vmul.f32 %v1409, %v1421
          %v1430 = vmul.f32 %v1416, %v1422
          %v1431 = vmul.f32 %v1414, %v1423
          %v1432 = vmul.f32 %v1412, %v1424
          %v1433 = vmul.f32 %v1410, %v1425
          %v1434 = vpack.c.bf16 %v1427, %v1426
          %v1435 = vpack.c.bf16 %v1429, %v1428
          %v1436 = vpack.c.bf16 %v1431, %v1430
          %v1437 = vpack.c.bf16 %v1433, %v1432
          %1438 = vst [vmem:[#allocation2 + $0x20] sm:$0xff] %v1434
          %1439 = vst [vmem:[#allocation2 + $0x28] sm:$0xff] %v1435
          %1440 = vst [vmem:[#allocation2 + $0x30] sm:$0xff] %v1436
          %1441 = vst [vmem:[#allocation2 + $0x38] sm:$0xff] %v1437
          %1442 = vrot.lane.b32.xlu0 %v1312, 15
          %v1443 = vpop.permute.xlu0 %1442
          %1444 = vrot.lane.b32.xlu0 %v1316, 15
          %v1445 = vpop.permute.xlu0 %1444
          %1446 = vrot.lane.b32.xlu0 %v1313, 15
          %v1447 = vpop.permute.xlu0 %1446
          %1448 = vrot.lane.b32.xlu0 %v1317, 15
          %v1449 = vpop.permute.xlu0 %1448
          %1450 = vrot.lane.b32.xlu0 %v1314, 15
          %v1451 = vpop.permute.xlu0 %1450
          %1452 = vrot.lane.b32.xlu0 %v1318, 15
          %v1453 = vpop.permute.xlu0 %1452
          %1454 = vrot.lane.b32.xlu0 %v1315, 15
          %v1455 = vpop.permute.xlu0 %1454
          %1456 = vrot.lane.b32.xlu0 %v1319, 15
          %v1457 = vpop.permute.xlu0 %1456
          %vm1458 = vcmp.lt.s32.totalorder %v1358, 15
          %v1459 = vsel %vm1458, %v1451, %v1455
          %v1460 = vsel %vm1458, %v1453, %v1457
          %v1461 = vsel %vm1458, %v1447, %v1451
          %v1462 = vsel %vm1458, %v1449, %v1453
          %v1463 = vsel %vm1458, %v1443, %v1447
          %v1464 = vsel %vm1458, %v1445, %v1449
          %v1465 = vsel %vm1458, %v1455, %v1443
          %v1466 = vsel %vm1458, %v1457, %v1445
          %s1467 = scalar_lea.vmem [#allocation10], 128
          %v1468 = vld [vmem:[%s1467] sm:$0xff]
          %v1469 = vld [vmem:[%s1467 + $0x8] sm:$0xff]
          %v1470 = vld [vmem:[%s1467 + $0x10] sm:$0xff]
          %v1471 = vld [vmem:[%s1467 + $0x18] sm:$0xff]
          %v1472 = vld [vmem:[%s1467 + $0x20] sm:$0xff]
          %v1473 = vld [vmem:[%s1467 + $0x28] sm:$0xff]
          %v1474 = vld [vmem:[%s1467 + $0x30] sm:$0xff]
          %v1475 = vld [vmem:[%s1467 + $0x38] sm:$0xff]
          %v1476 = vmul.f32 %v1465, %v1468
          %v1477 = vmul.f32 %v1463, %v1469
          %v1478 = vmul.f32 %v1461, %v1470
          %v1479 = vmul.f32 %v1459, %v1471
          %v1480 = vmul.f32 %v1466, %v1472
          %v1481 = vmul.f32 %v1464, %v1473
          %v1482 = vmul.f32 %v1462, %v1474
          %v1483 = vmul.f32 %v1460, %v1475
          %v1484 = vpack.c.bf16 %v1477, %v1476
          %v1485 = vpack.c.bf16 %v1479, %v1478
          %v1486 = vpack.c.bf16 %v1481, %v1480
          %v1487 = vpack.c.bf16 %v1483, %v1482
          %1488 = vst [vmem:[#allocation2 + $0x40] sm:$0xff] %v1484
          %1489 = vst [vmem:[#allocation2 + $0x48] sm:$0xff] %v1485
          %1490 = vst [vmem:[#allocation2 + $0x50] sm:$0xff] %v1486
          %1491 = vst [vmem:[#allocation2 + $0x58] sm:$0xff] %v1487
          %1492 = vrot.lane.b32.xlu0 %v1312, 1
          %v1493 = vpop.permute.xlu0 %1492
          %1494 = vrot.lane.b32.xlu0 %v1316, 1
          %v1495 = vpop.permute.xlu0 %1494
          %1496 = vrot.lane.b32.xlu0 %v1313, 1
          %v1497 = vpop.permute.xlu0 %1496
          %1498 = vrot.lane.b32.xlu0 %v1317, 1
          %v1499 = vpop.permute.xlu0 %1498
          %1500 = vrot.lane.b32.xlu0 %v1314, 1
          %v1501 = vpop.permute.xlu0 %1500
          %1502 = vrot.lane.b32.xlu0 %v1318, 1
          %v1503 = vpop.permute.xlu0 %1502
          %1504 = vrot.lane.b32.xlu0 %v1315, 1
          %v1505 = vpop.permute.xlu0 %1504
          %1506 = vrot.lane.b32.xlu0 %v1319, 1
          %v1507 = vpop.permute.xlu0 %1506
          %vm1508 = vcmp.lt.s32.totalorder %v1358, 1
          %v1509 = vsel %vm1508, %v1501, %v1505
          %v1510 = vsel %vm1508, %v1503, %v1507
          %v1511 = vsel %vm1508, %v1497, %v1501
          %v1512 = vsel %vm1508, %v1499, %v1503
          %v1513 = vsel %vm1508, %v1493, %v1497
          %v1514 = vsel %vm1508, %v1495, %v1499
          %v1515 = vsel %vm1508, %v1505, %v1493
          %v1516 = vsel %vm1508, %v1507, %v1495
          %s1517 = scalar_lea.vmem [#allocation10], 192
          %v1518 = vld [vmem:[%s1517] sm:$0xff]
          %v1519 = vld [vmem:[%s1517 + $0x8] sm:$0xff]
          %v1520 = vld [vmem:[%s1517 + $0x10] sm:$0xff]
          %v1521 = vld [vmem:[%s1517 + $0x18] sm:$0xff]
          %v1522 = vld [vmem:[%s1517 + $0x20] sm:$0xff]
          %v1523 = vld [vmem:[%s1517 + $0x28] sm:$0xff]
          %v1524 = vld [vmem:[%s1517 + $0x30] sm:$0xff]
          %v1525 = vld [vmem:[%s1517 + $0x38] sm:$0xff]
          %v1526 = vmul.f32 %v1515, %v1518
          %v1527 = vmul.f32 %v1513, %v1519
          %v1528 = vmul.f32 %v1511, %v1520
          %v1529 = vmul.f32 %v1509, %v1521
          %v1530 = vmul.f32 %v1516, %v1522
          %v1531 = vmul.f32 %v1514, %v1523
          %v1532 = vmul.f32 %v1512, %v1524
          %v1533 = vmul.f32 %v1510, %v1525
          %v1534 = vpack.c.bf16 %v1527, %v1526
          %v1535 = vpack.c.bf16 %v1529, %v1528
          %v1536 = vpack.c.bf16 %v1531, %v1530
          %v1537 = vpack.c.bf16 %v1533, %v1532
          %1538 = vst [vmem:[#allocation2 + $0x60] sm:$0xff] %v1534
          %1539 = vst [vmem:[#allocation2 + $0x68] sm:$0xff] %v1535
          %1540 = vst [vmem:[#allocation2 + $0x70] sm:$0xff] %v1536
          %1541 = vst [vmem:[#allocation2 + $0x78] sm:$0xff] %v1537
          %s1542 = scalar_lea.vmem [#allocation10], 256
          %v1543 = vld [vmem:[%s1542] sm:$0xff]
          %v1544 = vld [vmem:[%s1542 + $0x8] sm:$0xff]
          %v1545 = vld [vmem:[%s1542 + $0x10] sm:$0xff]
          %v1546 = vld [vmem:[%s1542 + $0x18] sm:$0xff]
          %v1547 = vld [vmem:[%s1542 + $0x20] sm:$0xff]
          %v1548 = vld [vmem:[%s1542 + $0x28] sm:$0xff]
          %v1549 = vld [vmem:[%s1542 + $0x30] sm:$0xff]
          %v1550 = vld [vmem:[%s1542 + $0x38] sm:$0xff]
          %v1551 = vmul.f32 %v1312, %v1543
          %v1552 = vmul.f32 %v1313, %v1544
          %v1553 = vmul.f32 %v1314, %v1545
          %v1554 = vmul.f32 %v1315, %v1546
          %v1555 = vmul.f32 %v1316, %v1547
          %v1556 = vmul.f32 %v1317, %v1548
          %v1557 = vmul.f32 %v1318, %v1549
          %v1558 = vmul.f32 %v1319, %v1550
          %v1559 = vpack.c.bf16 %v1552, %v1551
          %v1560 = vpack.c.bf16 %v1554, %v1553
          %v1561 = vpack.c.bf16 %v1556, %v1555
          %v1562 = vpack.c.bf16 %v1558, %v1557
          %1563 = vst [vmem:[#allocation2 + $0x80] sm:$0xff] %v1559
          %1564 = vst [vmem:[#allocation2 + $0x88] sm:$0xff] %v1560
          %1565 = vst [vmem:[#allocation2 + $0x90] sm:$0xff] %v1561
          %1566 = vst [vmem:[#allocation2 + $0x98] sm:$0xff] %v1562
          %1567 = vrot.lane.b32.xlu0 %v1312, 127
          %v1568 = vpop.permute.xlu0 %1567
          %1569 = vrot.lane.b32.xlu0 %v1316, 127
          %v1570 = vpop.permute.xlu0 %1569
          %1571 = vrot.lane.b32.xlu0 %v1313, 127
          %v1572 = vpop.permute.xlu0 %1571
          %1573 = vrot.lane.b32.xlu0 %v1317, 127
          %v1574 = vpop.permute.xlu0 %1573
          %1575 = vrot.lane.b32.xlu0 %v1314, 127
          %v1576 = vpop.permute.xlu0 %1575
          %1577 = vrot.lane.b32.xlu0 %v1318, 127
          %v1578 = vpop.permute.xlu0 %1577
          %1579 = vrot.lane.b32.xlu0 %v1315, 127
          %v1580 = vpop.permute.xlu0 %1579
          %1581 = vrot.lane.b32.xlu0 %v1319, 127
          %v1582 = vpop.permute.xlu0 %1581
          %vm1583 = vcmp.lt.s32.totalorder %v1358, 127
          %v1584 = vsel %vm1583, %v1576, %v1580
          %v1585 = vsel %vm1583, %v1578, %v1582
          %v1586 = vsel %vm1583, %v1572, %v1576
          %v1587 = vsel %vm1583, %v1574, %v1578
          %v1588 = vsel %vm1583, %v1568, %v1572
          %v1589 = vsel %vm1583, %v1570, %v1574
          %v1590 = vsel %vm1583, %v1580, %v1568
          %v1591 = vsel %vm1583, %v1582, %v1570
          %s1592 = scalar_lea.vmem [#allocation10], 320
          %v1593 = vld [vmem:[%s1592] sm:$0xff]
          %v1594 = vld [vmem:[%s1592 + $0x8] sm:$0xff]
          %v1595 = vld [vmem:[%s1592 + $0x10] sm:$0xff]
          %v1596 = vld [vmem:[%s1592 + $0x18] sm:$0xff]
          %v1597 = vld [vmem:[%s1592 + $0x20] sm:$0xff]
          %v1598 = vld [vmem:[%s1592 + $0x28] sm:$0xff]
          %v1599 = vld [vmem:[%s1592 + $0x30] sm:$0xff]
          %v1600 = vld [vmem:[%s1592 + $0x38] sm:$0xff]
          %v1601 = vmul.f32 %v1588, %v1593
          %v1602 = vmul.f32 %v1586, %v1594
          %v1603 = vmul.f32 %v1584, %v1595
          %v1604 = vmul.f32 %v1590, %v1596
          %v1605 = vmul.f32 %v1589, %v1597
          %v1606 = vmul.f32 %v1587, %v1598
          %v1607 = vmul.f32 %v1585, %v1599
          %v1608 = vmul.f32 %v1591, %v1600
          %v1609 = vpack.c.bf16 %v1602, %v1601
          %v1610 = vpack.c.bf16 %v1604, %v1603
          %v1611 = vpack.c.bf16 %v1606, %v1605
          %v1612 = vpack.c.bf16 %v1608, %v1607
          %1613 = vst [vmem:[#allocation2 + $0xa0] sm:$0xff] %v1609
          %1614 = vst [vmem:[#allocation2 + $0xa8] sm:$0xff] %v1610
          %1615 = vst [vmem:[#allocation2 + $0xb0] sm:$0xff] %v1611
          %1616 = vst [vmem:[#allocation2 + $0xb8] sm:$0xff] %v1612
          %1617 = vrot.lane.b32.xlu0 %v1312, 113
          %v1618 = vpop.permute.xlu0 %1617
          %1619 = vrot.lane.b32.xlu0 %v1316, 113
          %v1620 = vpop.permute.xlu0 %1619
          %1621 = vrot.lane.b32.xlu0 %v1313, 113
          %v1622 = vpop.permute.xlu0 %1621
          %1623 = vrot.lane.b32.xlu0 %v1317, 113
          %v1624 = vpop.permute.xlu0 %1623
          %1625 = vrot.lane.b32.xlu0 %v1314, 113
          %v1626 = vpop.permute.xlu0 %1625
          %1627 = vrot.lane.b32.xlu0 %v1318, 113
          %v1628 = vpop.permute.xlu0 %1627
          %1629 = vrot.lane.b32.xlu0 %v1315, 113
          %v1630 = vpop.permute.xlu0 %1629
          %1631 = vrot.lane.b32.xlu0 %v1319, 113
          %v1632 = vpop.permute.xlu0 %1631
          %vm1633 = vcmp.lt.s32.totalorder %v1358, 113
          %v1634 = vsel %vm1633, %v1626, %v1630
          %v1635 = vsel %vm1633, %v1628, %v1632
          %v1636 = vsel %vm1633, %v1622, %v1626
          %v1637 = vsel %vm1633, %v1624, %v1628
          %v1638 = vsel %vm1633, %v1618, %v1622
          %v1639 = vsel %vm1633, %v1620, %v1624
          %v1640 = vsel %vm1633, %v1630, %v1618
          %v1641 = vsel %vm1633, %v1632, %v1620
          %s1642 = scalar_lea.vmem [#allocation10], 384
          %v1643 = vld [vmem:[%s1642] sm:$0xff]
          %v1644 = vld [vmem:[%s1642 + $0x8] sm:$0xff]
          %v1645 = vld [vmem:[%s1642 + $0x10] sm:$0xff]
          %v1646 = vld [vmem:[%s1642 + $0x18] sm:$0xff]
          %v1647 = vld [vmem:[%s1642 + $0x20] sm:$0xff]
          %v1648 = vld [vmem:[%s1642 + $0x28] sm:$0xff]
          %v1649 = vld [vmem:[%s1642 + $0x30] sm:$0xff]
          %v1650 = vld [vmem:[%s1642 + $0x38] sm:$0xff]
          %v1651 = vmul.f32 %v1638, %v1643
          %v1652 = vmul.f32 %v1636, %v1644
          %v1653 = vmul.f32 %v1634, %v1645
          %v1654 = vmul.f32 %v1640, %v1646
          %v1655 = vmul.f32 %v1639, %v1647
          %v1656 = vmul.f32 %v1637, %v1648
          %v1657 = vmul.f32 %v1635, %v1649
          %v1658 = vmul.f32 %v1641, %v1650
          %v1659 = vpack.c.bf16 %v1652, %v1651
          %v1660 = vpack.c.bf16 %v1654, %v1653
          %v1661 = vpack.c.bf16 %v1656, %v1655
          %v1662 = vpack.c.bf16 %v1658, %v1657
          %1663 = vst [vmem:[#allocation2 + $0xc0] sm:$0xff] %v1659
          %1664 = vst [vmem:[#allocation2 + $0xc8] sm:$0xff] %v1660
          %1665 = vst [vmem:[#allocation2 + $0xd0] sm:$0xff] %v1661
          %1666 = vst [vmem:[#allocation2 + $0xd8] sm:$0xff] %v1662
          %1667 = vrot.lane.b32.xlu0 %v1312, 112
          %v1668 = vpop.permute.xlu0 %1667
          %1669 = vrot.lane.b32.xlu0 %v1316, 112
          %v1670 = vpop.permute.xlu0 %1669
          %1671 = vrot.lane.b32.xlu0 %v1313, 112
          %v1672 = vpop.permute.xlu0 %1671
          %1673 = vrot.lane.b32.xlu0 %v1317, 112
          %v1674 = vpop.permute.xlu0 %1673
          %1675 = vrot.lane.b32.xlu0 %v1314, 112
          %v1676 = vpop.permute.xlu0 %1675
          %1677 = vrot.lane.b32.xlu0 %v1318, 112
          %v1678 = vpop.permute.xlu0 %1677
          %1679 = vrot.lane.b32.xlu0 %v1315, 112
          %v1680 = vpop.permute.xlu0 %1679
          %1681 = vrot.lane.b32.xlu0 %v1319, 112
          %v1682 = vpop.permute.xlu0 %1681
          %vm1683 = vcmp.lt.s32.totalorder %v1358, 112
          %v1684 = vsel %vm1683, %v1676, %v1680
          %v1685 = vsel %vm1683, %v1678, %v1682
          %v1686 = vsel %vm1683, %v1672, %v1676
          %v1687 = vsel %vm1683, %v1674, %v1678
          %v1688 = vsel %vm1683, %v1668, %v1672
          %v1689 = vsel %vm1683, %v1670, %v1674
          %v1690 = vsel %vm1683, %v1680, %v1668
          %v1691 = vsel %vm1683, %v1682, %v1670
          %s1692 = scalar_lea.vmem [#allocation10], 448
          %v1693 = vld [vmem:[%s1692] sm:$0xff]
          %v1694 = vld [vmem:[%s1692 + $0x8] sm:$0xff]
          %v1695 = vld [vmem:[%s1692 + $0x10] sm:$0xff]
          %v1696 = vld [vmem:[%s1692 + $0x18] sm:$0xff]
          %v1697 = vld [vmem:[%s1692 + $0x20] sm:$0xff]
          %v1698 = vld [vmem:[%s1692 + $0x28] sm:$0xff]
          %v1699 = vld [vmem:[%s1692 + $0x30] sm:$0xff]
          %v1700 = vld [vmem:[%s1692 + $0x38] sm:$0xff]
          %v1701 = vmul.f32 %v1688, %v1693
          %v1702 = vmul.f32 %v1686, %v1694
          %v1703 = vmul.f32 %v1684, %v1695
          %v1704 = vmul.f32 %v1690, %v1696
          %v1705 = vmul.f32 %v1689, %v1697
          %v1706 = vmul.f32 %v1687, %v1698
          %v1707 = vmul.f32 %v1685, %v1699
          %v1708 = vmul.f32 %v1691, %v1700
          %v1709 = vpack.c.bf16 %v1702, %v1701
          %v1710 = vpack.c.bf16 %v1704, %v1703
          %v1711 = vpack.c.bf16 %v1706, %v1705
          %v1712 = vpack.c.bf16 %v1708, %v1707
          %1713 = vst [vmem:[#allocation2 + $0xe0] sm:$0xff] %v1709
          %1714 = vst [vmem:[#allocation2 + $0xe8] sm:$0xff] %v1710
          %1715 = vst [vmem:[#allocation2 + $0xf0] sm:$0xff] %v1711
          %1716 = vst [vmem:[#allocation2 + $0xf8] sm:$0xff] %v1712
          %1717 = vrot.lane.b32.xlu0 %v1312, 111
          %v1718 = vpop.permute.xlu0 %1717
          %1719 = vrot.lane.b32.xlu0 %v1316, 111
          %v1720 = vpop.permute.xlu0 %1719
          %1721 = vrot.lane.b32.xlu0 %v1313, 111
          %v1722 = vpop.permute.xlu0 %1721
          %1723 = vrot.lane.b32.xlu0 %v1317, 111
          %v1724 = vpop.permute.xlu0 %1723
          %1725 = vrot.lane.b32.xlu0 %v1314, 111
          %v1726 = vpop.permute.xlu0 %1725
          %1727 = vrot.lane.b32.xlu0 %v1318, 111
          %v1728 = vpop.permute.xlu0 %1727
          %1729 = vrot.lane.b32.xlu0 %v1315, 111
          %v1730 = vpop.permute.xlu0 %1729
          %1731 = vrot.lane.b32.xlu0 %v1319, 111
          %v1732 = vpop.permute.xlu0 %1731
          %vm1733 = vcmp.lt.s32.totalorder %v1358, 111
          %v1734 = vsel %vm1733, %v1726, %v1730
          %v1735 = vsel %vm1733, %v1728, %v1732
          %v1736 = vsel %vm1733, %v1722, %v1726
          %v1737 = vsel %vm1733, %v1724, %v1728
          %v1738 = vsel %vm1733, %v1718, %v1722
          %v1739 = vsel %vm1733, %v1720, %v1724
          %v1740 = vsel %vm1733, %v1730, %v1718
          %v1741 = vsel %vm1733, %v1732, %v1720
          %s1742 = scalar_lea.vmem [#allocation10], 512
          %v1743 = vld [vmem:[%s1742] sm:$0xff]
          %v1744 = vld [vmem:[%s1742 + $0x8] sm:$0xff]
          %v1745 = vld [vmem:[%s1742 + $0x10] sm:$0xff]
          %v1746 = vld [vmem:[%s1742 + $0x18] sm:$0xff]
          %v1747 = vld [vmem:[%s1742 + $0x20] sm:$0xff]
          %v1748 = vld [vmem:[%s1742 + $0x28] sm:$0xff]
          %v1749 = vld [vmem:[%s1742 + $0x30] sm:$0xff]
          %v1750 = vld [vmem:[%s1742 + $0x38] sm:$0xff]
          %v1751 = vmul.f32 %v1738, %v1743
          %v1752 = vmul.f32 %v1736, %v1744
          %v1753 = vmul.f32 %v1734, %v1745
          %v1754 = vmul.f32 %v1740, %v1746
          %v1755 = vmul.f32 %v1739, %v1747
          %v1756 = vmul.f32 %v1737, %v1748
          %v1757 = vmul.f32 %v1735, %v1749
          %v1758 = vmul.f32 %v1741, %v1750
          %v1759 = vpack.c.bf16 %v1752, %v1751
          %v1760 = vpack.c.bf16 %v1754, %v1753
          %v1761 = vpack.c.bf16 %v1756, %v1755
          %v1762 = vpack.c.bf16 %v1758, %v1757
          %1763 = vst [vmem:[#allocation2 + $0x100] sm:$0xff] %v1759
          %1764 = vst [vmem:[#allocation2 + $0x108] sm:$0xff] %v1760
          %1765 = vst [vmem:[#allocation2 + $0x110] sm:$0xff] %v1761
          %1766 = vst [vmem:[#allocation2 + $0x118] sm:$0xff] %v1762
        $region64: #{tpu_custom_call.1} parent=39 // pred_fallthru
          _
        %s1767 = sand.u32 %s158, 1
        %s1768 = scalar_lea.sflag [#allocation6], %s1767
        %s1769 = sand.u32 %s158, 1
        %s1770 = smul.addr %s1769, 64
        %s1771 = scalar_lea.vmem [#allocation12], %s1770
        // Predicated region
        $region65: #{tpu_custom_call.1} parent=39 // pred_check
          %p1772 = pneg %p168
        $region66: #{tpu_custom_call.1} parent=39 // pred_check_branch
          %1774 = sbr.rel (%p1772) target = $region68
        $region67: #{tpu_custom_call.1} parent=39 // pred_region
          %1776 = vsyncadd %s1768, 0
          %s1777 = smul.addr %s29, 8
          %s1778 = smul.addr %s28, 32
          %s1779 = sadd.s32 %s1777, %s1778
          %s1780 = smul.addr %s1779, 8
          %s1781 = scalar_lea.hbm %s5, %s1780
          %s1782 = sshll.u32 %s1771, 4
          %s1783 = int_to_ptr.vmem [resolvable:$true] %s1782
          %s1784 = sshll.u32 %s1781, 4
          %s1785 = int_to_ptr.hbm [resolvable:$true] %s1784
          %1790 = dma.vmem_to_hbm [thread:$0]  %s1783, 1024, %s1785, %s1768, 512, 512, 32
        $region68: #{tpu_custom_call.1} parent=39 // pred_fallthru
          _
      $region40: #{tpu_custom_call.1} parent=5 // pred_fallthru
        _
      %p1791 = scmp.le.s32.totalorder 2, %s19
      // Predicated region
      $region69: #{tpu_custom_call.1} parent=5 // pred_check
        %p1792 = pneg %p1791
      $region70: #{tpu_custom_call.1} parent=5 // pred_check_branch
        %1794 = sbr.rel (%p1792) target = $region72
      $region71: #{tpu_custom_call.1} parent=5 // pred_region
        %s1795 = ssub.s32 %s19, 2
        // Predicated region
        $region73: #{tpu_custom_call.1} parent=71 // pred_check
          %p1796 = pneg %p174
        $region74: #{tpu_custom_call.1} parent=71 // pred_check_branch
          %1798 = sbr.rel (%p1796) target = $region76
        $region75: #{tpu_custom_call.1} parent=71 // pred_region
          %s1799 = sand.u32 %s159, 1
          %s1800 = scalar_lea.sflag [#allocation6], %s1799
          %s1801 = sand.u32 %s159, 1
          %s1802 = smul.addr %s1801, 64
          %s1803 = scalar_lea.vmem [#allocation12], %s1802
          %1805 = dma.done %s1800, 1024
        $region76: #{tpu_custom_call.1} parent=71 // pred_fallthru
          _
      $region72: #{tpu_custom_call.1} parent=5 // pred_fallthru
        _
    $region6: #{tpu_custom_call.1} parent=1 // loop_footer
      %s23 = sadd.s32 1, %s19
    $region7: #{tpu_custom_call.1} parent=1 // loop_footer_branch
      %18 = sbr.rel target = $region3
    $region8: #{tpu_custom_call.1} parent=1 // loop_exit
      _
    %1806 = vsyncpa [#allocation5], 1
    %s1807 = scalar_lea.sflag [#allocation5], 1
    %1808 = vsyncpa %s1807, 1
    %1809 = vsyncpa [#allocation8], 1
    %1810 = vsyncpa [#allocation11], 1
    %1811 = vsyncpa [#allocation6], 1
    %s1812 = scalar_lea.sflag [#allocation6], 1
    %1813 = vsyncpa %s1812, 1

</llo_original>
